<compile_context>
chip_gen: v6e
topology: v6e:2x2x1
jax: 0.10.0
libtpu: 0.0.40
codegen_flags: <defaults>
</compile_context>

<pallas_src>
import jax
import jax.numpy as jnp
from jax import lax
from jax.experimental import pallas as pl
from jax.experimental.pallas import tpu as pltpu

EPS = 1e-5      # nn.GroupNorm default eps
SLOPE = 0.01    # nn.LeakyReLU default negative_slope
LANE = 128      # TPU lane width


def _group_norm(out, gmat, gamma, beta, inv_p):
    """GroupNorm on a (P, C) f32 tile.

    gmat is a (C, C) block-diagonal matrix averaging channels within a group,
    so group statistics are obtained reshape-free via two tiny matmuls.
    Variance is computed from centered values (numerically safer than
    E[x^2] - E[x]^2).
    """
    s1 = jnp.sum(out, axis=0, keepdims=True)                                 # (1, C)
    mean = jnp.dot(s1, gmat, preferred_element_type=jnp.float32) * inv_p     # group mean / chan
    d = out - mean
    s2 = jnp.sum(d * d, axis=0, keepdims=True)                               # (1, C)
    var = jnp.dot(s2, gmat, preferred_element_type=jnp.float32) * inv_p      # biased variance
    inv = lax.rsqrt(var + EPS)
    return d * inv * gamma + beta


def _leaky(x):
    return jnp.where(x > 0, x, SLOPE * x)


def _make_block_kernel(has_sc_conv, inv_p):
    """Returns a kernel; the shortcut-conv branch is resolved statically."""

    def kernel(*refs):
        if has_sc_conv:
            (patches_ref, sc_ref, w1_ref, b1_ref, g1_ref, be1_ref,
             w2_ref, b2_ref, wsc_ref, bsc_ref, g2_ref, be2_ref, gmat_ref,
             o_ref) = refs
        else:
            (patches_ref, sc_ref, w1_ref, b1_ref, g1_ref, be1_ref,
             w2_ref, b2_ref, g2_ref, be2_ref, gmat_ref, o_ref) = refs

        gmat = gmat_ref[...]

        # conv1 (3x3, stride s, pad 1) as im2col matmul: bf16 operands, f32 acc.
        out = jnp.dot(patches_ref[0], w1_ref[...],
                      preferred_element_type=jnp.float32) + b1_ref[...]
        out = _group_norm(out, gmat, g1_ref[...], be1_ref[...], inv_p)
        out = _leaky(out)

        # conv2 (1x1) as matmul: bf16 operands on the MXU, f32 accumulation.
        out = jnp.dot(out.astype(jnp.bfloat16), w2_ref[...],
                      preferred_element_type=jnp.float32) + b2_ref[...]

        # shortcut: either a real 1x1 conv, or a free direct add (identity path).
        if has_sc_conv:
            sc = jnp.dot(sc_ref[0], wsc_ref[...],
                         preferred_element_type=jnp.float32) + bsc_ref[...]
        else:
            sc = sc_ref[0].astype(jnp.float32)
        out = out + sc

        out = _group_norm(out, gmat, g2_ref[...], be2_ref[...], inv_p)
        out = _leaky(out)
        o_ref[0] = out.astype(o_ref.dtype)

    return kernel


def _pad_cols(a, cp):
    """Zero-pad the last dim to cp."""
    pad = cp - a.shape[-1]
    if pad == 0:
        return a
    return jnp.pad(a, [(0, 0)] * (a.ndim - 1) + [(0, pad)])


def block_forward(x_nchw, params, stride):
    N, Cin, H, W = x_nchw.shape
    Cout = params["w1"].shape[0]
    G = Cout // 4                      # nn.GroupNorm(out_channels // 4, out_channels)
    Cg = Cout // G
    Ho = (H + 2 - 3) // stride + 1
    Wo = (W + 2 - 3) // stride + 1
    P = Ho * Wo
    Cp = max(LANE, ((Cout + LANE - 1) // LANE) * LANE)   # lane-dense padded channel count
    f32 = jnp.float32

    x = jnp.transpose(x_nchw, (0, 2, 3, 1)).astype(f32)            # NHWC
    xp = jnp.pad(x, ((0, 0), (1, 1), (1, 1), (0, 0)))

    # im2col patches for the 3x3 conv, built in bf16 to cut HBM traffic / VMEM.
    cols = [xp[:, kh:kh + stride * (Ho - 1) + 1:stride,
                  kw:kw + stride * (Wo - 1) + 1:stride, :]
            for kh in range(3) for kw in range(3)]
    patches = jnp.concatenate(cols, axis=-1).reshape(N, P, 9 * Cin).astype(jnp.bfloat16)

    # shortcut input: AvgPool2d(stride, stride, ceil_mode=True) when stride > 1
    if stride > 1:
        assert H % stride == 0 and W % stride == 0  # TODO(synk): ragged ceil_mode pooling not handled
        sc = x.reshape(N, Ho, stride, Wo, stride, Cin).mean(axis=(2, 4))
    else:
        sc = x
    sc = sc.reshape(N, P, Cin)

    has_sc_conv = "wsc" in params
    if has_sc_conv:
        wsc = _pad_cols(params["wsc"][:, :, 0, 0].T.astype(f32), Cp).astype(jnp.bfloat16)
        bsc = _pad_cols(params["bsc"].reshape(1, Cout).astype(f32), Cp)
        sc_in = sc.astype(jnp.bfloat16)                            # (N, P, Cin)
    else:
        # identity shortcut (Cin == Cout): pad to Cp so the in-kernel add is lane-dense.
        sc_in = _pad_cols(sc, Cp).astype(jnp.bfloat16)             # (N, P, Cp)

    w1 = jnp.transpose(params["w1"], (2, 3, 1, 0)).reshape(9 * Cin, Cout).astype(f32)
    w1 = _pad_cols(w1, Cp).astype(jnp.bfloat16)
    b1 = _pad_cols(params["b1"].reshape(1, Cout).astype(f32), Cp)
    w2 = params["w2"][:, :, 0, 0].T.astype(f32)                    # (Cout_in, Cout_out)
    w2 = jnp.pad(w2, ((0, Cp - Cout), (0, Cp - Cout))).astype(jnp.bfloat16)
    b2 = _pad_cols(params["b2"].reshape(1, Cout).astype(f32), Cp)
    g1 = _pad_cols(params["g1"].reshape(1, Cout).astype(f32), Cp)
    be1 = _pad_cols(params["be1"].reshape(1, Cout).astype(f32), Cp)
    g2 = _pad_cols(params["g2"].reshape(1, Cout).astype(f32), Cp)
    be2 = _pad_cols(params["be2"].reshape(1, Cout).astype(f32), Cp)

    # Block-diagonal group-averaging matrix; zero rows/cols for padded channels.
    gid = jnp.arange(Cout) // Cg
    gmat = (gid[:, None] == gid[None, :]).astype(f32) / Cg
    gmat = jnp.pad(gmat, ((0, Cp - Cout), (0, Cp - Cout)))

    full = lambda a: pl.BlockSpec(a.shape, lambda n, _nd=a.ndim: (0,) * _nd)
    per_n = lambda a: pl.BlockSpec((1,) + a.shape[1:], lambda n: (n, 0, 0))

    if has_sc_conv:
        operands = (patches, sc_in, w1, b1, g1, be1, w2, b2, wsc, bsc, g2, be2, gmat)
    else:
        operands = (patches, sc_in, w1, b1, g1, be1, w2, b2, g2, be2, gmat)
    in_specs = [per_n(patches), per_n(sc_in)] + [full(a) for a in operands[2:]]

    kernel = _make_block_kernel(has_sc_conv, 1.0 / P)

    out = pl.pallas_call(
        kernel,
        out_shape=jax.ShapeDtypeStruct((N, P, Cp), jnp.float32),
        grid_spec=pltpu.PrefetchScalarGridSpec(
            num_scalar_prefetch=0,
            grid=(N,),
            in_specs=in_specs,
            out_specs=pl.BlockSpec((1, P, Cp), lambda n: (n, 0, 0)),
        ),
        compiler_params=pltpu.CompilerParams(
            # samples are independent -> shard grid across TensorCores (v7x megacore)
            dimension_semantics=("parallel",),
            vmem_limit_bytes=48 * 1024 * 1024,
        ),
    )(*operands)

    out = out[:, :, :Cout].reshape(N, Ho, Wo, Cout)
    return jnp.transpose(out, (0, 3, 1, 2))                        # back to NCHW


# ---------------- pure-JAX reference (for correctness check) ----------------
def _gn_ref(x, G, gamma, beta):
    N, C, H, W = x.shape
    xg = x.reshape(N, G, C // G, H, W)
    mean = xg.mean(axis=(2, 3, 4), keepdims=True)
    var = xg.var(axis=(2, 3, 4), keepdims=True)
    xg = (xg - mean) / jnp.sqrt(var + EPS)
    x = xg.reshape(N, C, H, W)
    return x * gamma[None, :, None, None] + beta[None, :, None, None]


def ref_forward(x, params, stride):
    Cout = params["w1"].shape[0]
    G = Cout // 4
    dn = ("NCHW", "OIHW", "NCHW")
    out = lax.conv_general_dilated(x, params["w1"], (stride, stride), ((1, 1), (1, 1)),
                                   dimension_numbers=dn) + params["b1"][None, :, None, None]
    out = _gn_ref(out, G, params["g1"], params["be1"])
    out = jnp.where(out > 0, out, SLOPE * out)
    out = lax.conv_general_dilated(out, params["w2"], (1, 1), ((0, 0), (0, 0)),
                                   dimension_numbers=dn) + params["b2"][None, :, None, None]
    xs = x
    if stride > 1:
        N, Cin, H, W = x.shape
        xs = x.reshape(N, Cin, H // stride, stride, W // stride, stride).mean(axis=(3, 5))
    if "wsc" in params:
        xs = lax.conv_general_dilated(xs, params["wsc"], (1, 1), ((0, 0), (0, 0)),
                                      dimension_numbers=dn) + params["bsc"][None, :, None, None]
    out = out + xs
    out = _gn_ref(out, G, params["g2"], params["be2"])
    out = jnp.where(out > 0, out, SLOPE * out)
    return out


def _make_params(key, Cin, Cout, with_sc_conv):
    ks = jax.random.split(key, 10)
    p = {
        "w1": 0.1 * jax.random.normal(ks[0], (Cout, Cin, 3, 3), jnp.float32),
        "b1": 0.1 * jax.random.normal(ks[1], (Cout,), jnp.float32),
        "g1": 1.0 + 0.1 * jax.random.normal(ks[2], (Cout,), jnp.float32),
        "be1": 0.1 * jax.random.normal(ks[3], (Cout,), jnp.float32),
        "w2": 0.1 * jax.random.normal(ks[4], (Cout, Cout, 1, 1), jnp.float32),
        "b2": 0.1 * jax.random.normal(ks[5], (Cout,), jnp.float32),
        "g2": 1.0 + 0.1 * jax.random.normal(ks[6], (Cout,), jnp.float32),
        "be2": 0.1 * jax.random.normal(ks[7], (Cout,), jnp.float32),
    }
    if with_sc_conv:
        p["wsc"] = 0.1 * jax.random.normal(ks[8], (Cout, Cin, 1, 1), jnp.float32)
        p["bsc"] = 0.1 * jax.random.normal(ks[9], (Cout,), jnp.float32)
    return p


if __name__ == "__main__":
    kp, kx = jax.random.split(jax.random.PRNGKey(0))

    # Case 1: stride=2, Cin != Cout -> process_x = AvgPool + Conv1x1 (shortcut-matmul kernel)
    N, Cin, Cout, H, W, stride = 2, 4, 8, 16, 16, 2
    params = _make_params(kp, Cin, Cout, with_sc_conv=True)
    x = jax.random.normal(kx, (N, Cin, H, W), jnp.float32)
    out = jax.block_until_ready(block_forward(x, params, stride))
    ref = ref_forward(x, params, stride)
    assert out.shape == ref.shape == (N, Cout, H // stride, W // stride)
    err1 = float(jnp.max(jnp.abs(out - ref)))
    assert jnp.allclose(out, ref, atol=5e-2, rtol=5e-2), f"case1 max err {err1}"

    # Case 2: stride=1, Cin == Cout -> process_x is None (identity-shortcut kernel variant)
    N, Cin, Cout, H, W, stride = 2, 8, 8, 16, 16, 1
    params = _make_params(kp, Cin, Cout, with_sc_conv=False)
    x = jax.random.normal(kx, (N, Cin, H, W), jnp.float32)
    out = jax.block_until_ready(block_forward(x, params, stride))
    ref = ref_forward(x, params, stride)
    assert out.shape == ref.shape == (N, Cout, H, W)
    err2 = float(jnp.max(jnp.abs(out - ref)))
    assert jnp.allclose(out, ref, atol=5e-2, rtol=5e-2), f"case2 max err {err2}"

    print("KERNEL_OK")
</pallas_src>

<mosaic_0001>
module attributes {stable_mosaic.version = 11 : i64} {
  func.func @kernel(%arg0: i32, %arg1: memref<1x64x36xbf16, #tpu.memory_space<vmem>>, %arg2: memref<1x64x4xbf16, #tpu.memory_space<vmem>>, %arg3: memref<36x128xbf16, #tpu.memory_space<vmem>>, %arg4: memref<1x128xf32, #tpu.memory_space<vmem>>, %arg5: memref<1x128xf32, #tpu.memory_space<vmem>>, %arg6: memref<1x128xf32, #tpu.memory_space<vmem>>, %arg7: memref<128x128xbf16, #tpu.memory_space<vmem>>, %arg8: memref<1x128xf32, #tpu.memory_space<vmem>>, %arg9: memref<4x128xbf16, #tpu.memory_space<vmem>>, %arg10: memref<1x128xf32, #tpu.memory_space<vmem>>, %arg11: memref<1x128xf32, #tpu.memory_space<vmem>>, %arg12: memref<1x128xf32, #tpu.memory_space<vmem>>, %arg13: memref<128x128xf32, #tpu.memory_space<vmem>>, %arg14: memref<1x64x128xf32, #tpu.memory_space<vmem>>) attributes {dimension_semantics = [#tpu.dimension_semantics<parallel>], iteration_bounds = array<i64: 2>, scalar_prefetch = 0 : i64, scratch_operands = 0 : i64, tpu.core_type = #tpu.core_type<tc>, window_params = [{transform_indices = @transform_0, window_bounds = array<i64: 1, 64, 36>}, {transform_indices = @transform_1, window_bounds = array<i64: 1, 64, 4>}, {pipeline_mode = #tpu.pipeline_mode<synchronous>, transform_indices = @transform_2, window_bounds = array<i64: 36, 128>}, {pipeline_mode = #tpu.pipeline_mode<synchronous>, transform_indices = @transform_3, window_bounds = array<i64: 1, 128>}, {pipeline_mode = #tpu.pipeline_mode<synchronous>, transform_indices = @transform_4, window_bounds = array<i64: 1, 128>}, {pipeline_mode = #tpu.pipeline_mode<synchronous>, transform_indices = @transform_5, window_bounds = array<i64: 1, 128>}, {pipeline_mode = #tpu.pipeline_mode<synchronous>, transform_indices = @transform_6, window_bounds = array<i64: 128, 128>}, {pipeline_mode = #tpu.pipeline_mode<synchronous>, transform_indices = @transform_7, window_bounds = array<i64: 1, 128>}, {pipeline_mode = #tpu.pipeline_mode<synchronous>, transform_indices = @transform_8, window_bounds = array<i64: 4, 128>}, {pipeline_mode = #tpu.pipeline_mode<synchronous>, transform_indices = @transform_9, window_bounds = array<i64: 1, 128>}, {pipeline_mode = #tpu.pipeline_mode<synchronous>, transform_indices = @transform_10, window_bounds = array<i64: 1, 128>}, {pipeline_mode = #tpu.pipeline_mode<synchronous>, transform_indices = @transform_11, window_bounds = array<i64: 1, 128>}, {pipeline_mode = #tpu.pipeline_mode<synchronous>, transform_indices = @transform_12, window_bounds = array<i64: 128, 128>}, {transform_indices = @transform_13, window_bounds = array<i64: 1, 64, 128>}]} {
    %c0 = arith.constant 0 : index
    %c0_0 = arith.constant 0 : index
    %0 = vector.load %arg13[%c0, %c0_0] : memref<128x128xf32, #tpu.memory_space<vmem>>, vector<128x128xf32>
    %c0_1 = arith.constant 0 : index
    %c0_2 = arith.constant 0 : index
    %c0_3 = arith.constant 0 : index
    %1 = vector.load %arg1[%c0_1, %c0_2, %c0_3] : memref<1x64x36xbf16, #tpu.memory_space<vmem>>, vector<1x64x36xbf16>
    %2 = vector.shape_cast %1 : vector<1x64x36xbf16> to vector<64x36xbf16>
    %c0_4 = arith.constant 0 : index
    %c0_5 = arith.constant 0 : index
    %3 = vector.load %arg3[%c0_4, %c0_5] : memref<36x128xbf16, #tpu.memory_space<vmem>>, vector<36x128xbf16>
    %cst = arith.constant dense<0.000000e+00> : vector<64x128xf32>
    %4 = tpu.matmul %2, %3, %cst {dimension_numbers = #tpu.dot_dimension_numbers<[1], [0], [0], [1], [0, 0, 1, 1], [], []>} : vector<64x36xbf16>, vector<36x128xbf16>, vector<64x128xf32> -> vector<64x128xf32>
    %c0_6 = arith.constant 0 : index
    %c0_7 = arith.constant 0 : index
    %5 = vector.load %arg4[%c0_6, %c0_7] : memref<1x128xf32, #tpu.memory_space<vmem>>, vector<1x128xf32>
    %6 = vector.broadcast %5 : vector<1x128xf32> to vector<64x128xf32>
    %7 = arith.addf %4, %6 : vector<64x128xf32>
    %c0_8 = arith.constant 0 : index
    %c0_9 = arith.constant 0 : index
    %8 = vector.load %arg5[%c0_8, %c0_9] : memref<1x128xf32, #tpu.memory_space<vmem>>, vector<1x128xf32>
    %c0_10 = arith.constant 0 : index
    %c0_11 = arith.constant 0 : index
    %9 = vector.load %arg6[%c0_10, %c0_11] : memref<1x128xf32, #tpu.memory_space<vmem>>, vector<1x128xf32>
    %cst_12 = arith.constant dense<0.000000e+00> : vector<128xf32>
    %10 = vector.multi_reduction <add>, %7, %cst_12 [0] : vector<64x128xf32> to vector<128xf32>
    %11 = vector.shape_cast %10 : vector<128xf32> to vector<1x128xf32>
    %cst_13 = arith.constant dense<0.000000e+00> : vector<1x128xf32>
    %12 = tpu.matmul %11, %0, %cst_13 {dimension_numbers = #tpu.dot_dimension_numbers<[1], [0], [0], [1], [0, 0, 1, 1], [], []>} : vector<1x128xf32>, vector<128x128xf32>, vector<1x128xf32> -> vector<1x128xf32>
    %cst_14 = arith.constant 1.562500e-02 : f32
    %13 = vector.broadcast %cst_14 : f32 to vector<1x128xf32>
    %14 = arith.mulf %12, %13 : vector<1x128xf32>
    %15 = vector.broadcast %14 : vector<1x128xf32> to vector<64x128xf32>
    %16 = arith.subf %7, %15 : vector<64x128xf32>
    %17 = arith.mulf %16, %16 : vector<64x128xf32>
    %cst_15 = arith.constant dense<0.000000e+00> : vector<128xf32>
    %18 = vector.multi_reduction <add>, %17, %cst_15 [0] : vector<64x128xf32> to vector<128xf32>
    %19 = vector.shape_cast %18 : vector<128xf32> to vector<1x128xf32>
    %cst_16 = arith.constant dense<0.000000e+00> : vector<1x128xf32>
    %20 = tpu.matmul %19, %0, %cst_16 {dimension_numbers = #tpu.dot_dimension_numbers<[1], [0], [0], [1], [0, 0, 1, 1], [], []>} : vector<1x128xf32>, vector<128x128xf32>, vector<1x128xf32> -> vector<1x128xf32>
    %cst_17 = arith.constant 1.562500e-02 : f32
    %21 = vector.broadcast %cst_17 : f32 to vector<1x128xf32>
    %22 = arith.mulf %20, %21 : vector<1x128xf32>
    %cst_18 = arith.constant 9.99999974E-6 : f32
    %23 = vector.broadcast %cst_18 : f32 to vector<1x128xf32>
    %24 = arith.addf %22, %23 : vector<1x128xf32>
    %25 = math.rsqrt %24 : vector<1x128xf32>
    %26 = vector.broadcast %25 : vector<1x128xf32> to vector<64x128xf32>
    %27 = arith.mulf %16, %26 : vector<64x128xf32>
    %28 = vector.broadcast %8 : vector<1x128xf32> to vector<64x128xf32>
    %29 = arith.mulf %27, %28 : vector<64x128xf32>
    %30 = vector.broadcast %9 : vector<1x128xf32> to vector<64x128xf32>
    %31 = arith.addf %29, %30 : vector<64x128xf32>
    %cst_19 = arith.constant 0.000000e+00 : f32
    %32 = vector.broadcast %cst_19 : f32 to vector<64x128xf32>
    %33 = arith.cmpf ogt, %31, %32 : vector<64x128xf32>
    %cst_20 = arith.constant 0.00999999977 : f32
    %34 = vector.broadcast %cst_20 : f32 to vector<64x128xf32>
    %35 = arith.mulf %34, %31 : vector<64x128xf32>
    %36 = arith.select %33, %31, %35 : vector<64x128xi1>, vector<64x128xf32>
    %37 = arith.truncf %36 : vector<64x128xf32> to vector<64x128xbf16>
    %c0_21 = arith.constant 0 : index
    %c0_22 = arith.constant 0 : index
    %38 = vector.load %arg7[%c0_21, %c0_22] : memref<128x128xbf16, #tpu.memory_space<vmem>>, vector<128x128xbf16>
    %cst_23 = arith.constant dense<0.000000e+00> : vector<64x128xf32>
    %39 = tpu.matmul %37, %38, %cst_23 {dimension_numbers = #tpu.dot_dimension_numbers<[1], [0], [0], [1], [0, 0, 1, 1], [], []>} : vector<64x128xbf16>, vector<128x128xbf16>, vector<64x128xf32> -> vector<64x128xf32>
    %c0_24 = arith.constant 0 : index
    %c0_25 = arith.constant 0 : index
    %40 = vector.load %arg8[%c0_24, %c0_25] : memref<1x128xf32, #tpu.memory_space<vmem>>, vector<1x128xf32>
    %41 = vector.broadcast %40 : vector<1x128xf32> to vector<64x128xf32>
    %42 = arith.addf %39, %41 : vector<64x128xf32>
    %c0_26 = arith.constant 0 : index
    %c0_27 = arith.constant 0 : index
    %c0_28 = arith.constant 0 : index
    %43 = vector.load %arg2[%c0_26, %c0_27, %c0_28] : memref<1x64x4xbf16, #tpu.memory_space<vmem>>, vector<1x64x4xbf16>
    %44 = vector.shape_cast %43 : vector<1x64x4xbf16> to vector<64x4xbf16>
    %c0_29 = arith.constant 0 : index
    %c0_30 = arith.constant 0 : index
    %45 = vector.load %arg9[%c0_29, %c0_30] : memref<4x128xbf16, #tpu.memory_space<vmem>>, vector<4x128xbf16>
    %cst_31 = arith.constant dense<0.000000e+00> : vector<64x128xf32>
    %46 = tpu.matmul %44, %45, %cst_31 {dimension_numbers = #tpu.dot_dimension_numbers<[1], [0], [0], [1], [0, 0, 1, 1], [], []>} : vector<64x4xbf16>, vector<4x128xbf16>, vector<64x128xf32> -> vector<64x128xf32>
    %c0_32 = arith.constant 0 : index
    %c0_33 = arith.constant 0 : index
    %47 = vector.load %arg10[%c0_32, %c0_33] : memref<1x128xf32, #tpu.memory_space<vmem>>, vector<1x128xf32>
    %48 = vector.broadcast %47 : vector<1x128xf32> to vector<64x128xf32>
    %49 = arith.addf %46, %48 : vector<64x128xf32>
    %50 = arith.addf %42, %49 : vector<64x128xf32>
    %c0_34 = arith.constant 0 : index
    %c0_35 = arith.constant 0 : index
    %51 = vector.load %arg11[%c0_34, %c0_35] : memref<1x128xf32, #tpu.memory_space<vmem>>, vector<1x128xf32>
    %c0_36 = arith.constant 0 : index
    %c0_37 = arith.constant 0 : index
    %52 = vector.load %arg12[%c0_36, %c0_37] : memref<1x128xf32, #tpu.memory_space<vmem>>, vector<1x128xf32>
    %cst_38 = arith.constant dense<0.000000e+00> : vector<128xf32>
    %53 = vector.multi_reduction <add>, %50, %cst_38 [0] : vector<64x128xf32> to vector<128xf32>
    %54 = vector.shape_cast %53 : vector<128xf32> to vector<1x128xf32>
    %cst_39 = arith.constant dense<0.000000e+00> : vector<1x128xf32>
    %55 = tpu.matmul %54, %0, %cst_39 {dimension_numbers = #tpu.dot_dimension_numbers<[1], [0], [0], [1], [0, 0, 1, 1], [], []>} : vector<1x128xf32>, vector<128x128xf32>, vector<1x128xf32> -> vector<1x128xf32>
    %cst_40 = arith.constant 1.562500e-02 : f32
    %56 = vector.broadcast %cst_40 : f32 to vector<1x128xf32>
    %57 = arith.mulf %55, %56 : vector<1x128xf32>
    %58 = vector.broadcast %57 : vector<1x128xf32> to vector<64x128xf32>
    %59 = arith.subf %50, %58 : vector<64x128xf32>
    %60 = arith.mulf %59, %59 : vector<64x128xf32>
    %cst_41 = arith.constant dense<0.000000e+00> : vector<128xf32>
    %61 = vector.multi_reduction <add>, %60, %cst_41 [0] : vector<64x128xf32> to vector<128xf32>
    %62 = vector.shape_cast %61 : vector<128xf32> to vector<1x128xf32>
    %cst_42 = arith.constant dense<0.000000e+00> : vector<1x128xf32>
    %63 = tpu.matmul %62, %0, %cst_42 {dimension_numbers = #tpu.dot_dimension_numbers<[1], [0], [0], [1], [0, 0, 1, 1], [], []>} : vector<1x128xf32>, vector<128x128xf32>, vector<1x128xf32> -> vector<1x128xf32>
    %cst_43 = arith.constant 1.562500e-02 : f32
    %64 = vector.broadcast %cst_43 : f32 to vector<1x128xf32>
    %65 = arith.mulf %63, %64 : vector<1x128xf32>
    %cst_44 = arith.constant 9.99999974E-6 : f32
    %66 = vector.broadcast %cst_44 : f32 to vector<1x128xf32>
    %67 = arith.addf %65, %66 : vector<1x128xf32>
    %68 = math.rsqrt %67 : vector<1x128xf32>
    %69 = vector.broadcast %68 : vector<1x128xf32> to vector<64x128xf32>
    %70 = arith.mulf %59, %69 : vector<64x128xf32>
    %71 = vector.broadcast %51 : vector<1x128xf32> to vector<64x128xf32>
    %72 = arith.mulf %70, %71 : vector<64x128xf32>
    %73 = vector.broadcast %52 : vector<1x128xf32> to vector<64x128xf32>
    %74 = arith.addf %72, %73 : vector<64x128xf32>
    %cst_45 = arith.constant 0.000000e+00 : f32
    %75 = vector.broadcast %cst_45 : f32 to vector<64x128xf32>
    %76 = arith.cmpf ogt, %74, %75 : vector<64x128xf32>
    %cst_46 = arith.constant 0.00999999977 : f32
    %77 = vector.broadcast %cst_46 : f32 to vector<64x128xf32>
    %78 = arith.mulf %77, %74 : vector<64x128xf32>
    %79 = arith.select %76, %74, %78 : vector<64x128xi1>, vector<64x128xf32>
    %c0_47 = arith.constant 0 : index
    %c0_48 = arith.constant 0 : index
    %c0_49 = arith.constant 0 : index
    %80 = vector.load %arg14[%c0_47, %c0_48, %c0_49] : memref<1x64x128xf32, #tpu.memory_space<vmem>>, vector<1x64x128xf32>
    %81 = vector.shape_cast %80 : vector<1x64x128xf32> to vector<64x128xf32>
    %82 = vector.shape_cast %79 : vector<64x128xf32> to vector<1x64x128xf32>
    tpu.vector_store %arg14[%c0_47, %c0_48, %c0_49], %82 {strides = array<i32>} : memref<1x64x128xf32, #tpu.memory_space<vmem>>, vector<1x64x128xf32>,
    return
  }
  func.func @transform_0(%arg0: i32) -> (i32, i32, i32) {
    %c0_i32 = arith.constant 0 : i32
    %c0_i32_0 = arith.constant 0 : i32
    %c0_i32_1 = arith.constant 0 : i32
    return %arg0, %c0_i32, %c0_i32_0 : i32, i32, i32
  }
  func.func @transform_1(%arg0: i32) -> (i32, i32, i32) {
    %c0_i32 = arith.constant 0 : i32
    %c0_i32_0 = arith.constant 0 : i32
    %c0_i32_1 = arith.constant 0 : i32
    return %arg0, %c0_i32, %c0_i32_0 : i32, i32, i32
  }
  func.func @transform_2(%arg0: i32) -> (i32, i32) {
    %c0_i32 = arith.constant 0 : i32
    %c0_i32_0 = arith.constant 0 : i32
    %c0_i32_1 = arith.constant 0 : i32
    return %c0_i32, %c0_i32_0 : i32, i32
  }
  func.func @transform_3(%arg0: i32) -> (i32, i32) {
    %c0_i32 = arith.constant 0 : i32
    %c0_i32_0 = arith.constant 0 : i32
    %c0_i32_1 = arith.constant 0 : i32
    return %c0_i32, %c0_i32_0 : i32, i32
  }
  func.func @transform_4(%arg0: i32) -> (i32, i32) {
    %c0_i32 = arith.constant 0 : i32
    %c0_i32_0 = arith.constant 0 : i32
    %c0_i32_1 = arith.constant 0 : i32
    return %c0_i32, %c0_i32_0 : i32, i32
  }
  func.func @transform_5(%arg0: i32) -> (i32, i32) {
    %c0_i32 = arith.constant 0 : i32
    %c0_i32_0 = arith.constant 0 : i32
    %c0_i32_1 = arith.constant 0 : i32
    return %c0_i32, %c0_i32_0 : i32, i32
  }
  func.func @transform_6(%arg0: i32) -> (i32, i32) {
    %c0_i32 = arith.constant 0 : i32
    %c0_i32_0 = arith.constant 0 : i32
    %c0_i32_1 = arith.constant 0 : i32
    return %c0_i32, %c0_i32_0 : i32, i32
  }
  func.func @transform_7(%arg0: i32) -> (i32, i32) {
    %c0_i32 = arith.constant 0 : i32
    %c0_i32_0 = arith.constant 0 : i32
    %c0_i32_1 = arith.constant 0 : i32
    return %c0_i32, %c0_i32_0 : i32, i32
  }
  func.func @transform_8(%arg0: i32) -> (i32, i32) {
    %c0_i32 = arith.constant 0 : i32
    %c0_i32_0 = arith.constant 0 : i32
    %c0_i32_1 = arith.constant 0 : i32
    return %c0_i32, %c0_i32_0 : i32, i32
  }
  func.func @transform_9(%arg0: i32) -> (i32, i32) {
    %c0_i32 = arith.constant 0 : i32
    %c0_i32_0 = arith.constant 0 : i32
    %c0_i32_1 = arith.constant 0 : i32
    return %c0_i32, %c0_i32_0 : i32, i32
  }
  func.func @transform_10(%arg0: i32) -> (i32, i32) {
    %c0_i32 = arith.constant 0 : i32
    %c0_i32_0 = arith.constant 0 : i32
    %c0_i32_1 = arith.constant 0 : i32
    return %c0_i32, %c0_i32_0 : i32, i32
  }
  func.func @transform_11(%arg0: i32) -> (i32, i32) {
    %c0_i32 = arith.constant 0 : i32
    %c0_i32_0 = arith.constant 0 : i32
    %c0_i32_1 = arith.constant 0 : i32
    return %c0_i32, %c0_i32_0 : i32, i32
  }
  func.func @transform_12(%arg0: i32) -> (i32, i32) {
    %c0_i32 = arith.constant 0 : i32
    %c0_i32_0 = arith.constant 0 : i32
    %c0_i32_1 = arith.constant 0 : i32
    return %c0_i32, %c0_i32_0 : i32, i32
  }
  func.func @transform_13(%arg0: i32) -> (i32, i32, i32) {
    %c0_i32 = arith.constant 0 : i32
    %c0_i32_0 = arith.constant 0 : i32
    %c0_i32_1 = arith.constant 0 : i32
    return %arg0, %c0_i32, %c0_i32_0 : i32, i32, i32
  }
}

</mosaic_0001>

<llo_original>
// kernel: tpu_custom_call.1
$region0: #{tpu_custom_call.1}
  #allocation0 [shape = 'u32[]', space=smem, size = 0x4, offset = 0x4, fixed_abs, tag = 'smem constant byte address 0x4 - core index']
  #allocation1 [shape = 'u32[144,128]{1,0:T(1,128)}', space=vmem, size = 0x12000, scoped, tag = 'internal scratch']
  %s0 = inlined_call_operand.vmem [shape: bf16[2,64,36], index: 0, kind: input, shape index: {}]
  %s1 = inlined_call_operand.vmem [shape: bf16[2,64,4], index: 1, kind: input, shape index: {}]
  %s2 = inlined_call_operand.vmem [shape: bf16[36,128], index: 2, kind: input, shape index: {}]
  %s3 = inlined_call_operand.vmem [shape: f32[1,128], index: 3, kind: input, shape index: {}]
  %s4 = inlined_call_operand.vmem [shape: f32[1,128], index: 4, kind: input, shape index: {}]
  %s5 = inlined_call_operand.vmem [shape: f32[1,128], index: 5, kind: input, shape index: {}]
  %s6 = inlined_call_operand.hbm [shape: bf16[128,128], index: 6, kind: input, shape index: {}]
  %s7 = inlined_call_operand.vmem [shape: f32[1,128], index: 7, kind: input, shape index: {}]
  %s8 = inlined_call_operand.vmem [shape: bf16[4,128], index: 8, kind: input, shape index: {}]
  %s9 = inlined_call_operand.vmem [shape: f32[1,128], index: 9, kind: input, shape index: {}]
  %s10 = inlined_call_operand.vmem [shape: f32[1,128], index: 10, kind: input, shape index: {}]
  %s11 = inlined_call_operand.vmem [shape: f32[1,128], index: 11, kind: input, shape index: {}]
  %s12 = inlined_call_operand.vmem [shape: f32[128,128], index: 12, kind: input, shape index: {}]
  %s13 = inlined_call_operand.hbm [shape: f32[2,64,128], index: 13, kind: output, shape index: {}]
  %s14 = sld [smem:[#allocation0]]
  $region89: #{tpu_custom_call.1} parent=0
    _
  %s16 = ssub.s32 1, %s14
  %s17 = scalar_select 0, %s16, %s14
  $region1: #{tpu_custom_call.1} parent=0
    #allocation2 [shape = 'u8[32768]{0}', space=vmem, size = 0x8000, scoped, tag = 'input window, operand 6, single buffered']
    #allocation3 [shape = 's32[2]{0}', space=sflag, size = 0x8, scoped, tag = 'scoped memory for tpu_custom_call.1']
    #allocation4 [shape = 's32[2]{0}', space=sflag, size = 0x8, scoped, tag = 'scoped memory for tpu_custom_call.1']
    #allocation5 [shape = 'u8[65536]{0}', space=vmem, size = 0x10000, scoped, tag = 'output window, operand 0']
    %18 = vsyncpa [#allocation3], 0
    %19 = vsyncpa [#allocation4], 0
    %s20 = scalar_lea.sflag [#allocation4], 1
    %21 = vsyncpa %s20, 0
    loop: start=0, step=1, limit=4
    $region2: #{tpu_custom_call.1} parent=1 // loop_pre_header
      _
    $region3: #{tpu_custom_call.1} parent=1 // loop_header
      %s23 = sphi 0, %s27
      %p24 = scmp.ge.s32.totalorder %s23, 4
      %s33 = sphi 0, %s35
      %s36 = sphi 0, %s33
      %s37 = sphi 0, %s36
      %s53 = sphi 0, %s37
      %s59 = sphi 0, %s61
      %s62 = sphi 0, %s59
      %s63 = sphi 0, %s62
      %s79 = sphi 0, %s63
      %s83 = sphi 0, %s83
      %s85 = sphi 0, %s83
      %s86 = sphi 0, %s85
      %s100 = sphi 0, %s86
      %s104 = sphi 0, %s104
      %s106 = sphi 0, %s104
      %s107 = sphi 0, %s106
      %s121 = sphi 0, %s107
      %s125 = sphi 0, %s125
      %s127 = sphi 0, %s125
      %s128 = sphi 0, %s127
      %s142 = sphi 0, %s128
      %s146 = sphi 0, %s146
      %s148 = sphi 0, %s146
      %s149 = sphi 0, %s148
      %s163 = sphi 0, %s149
      %s167 = sphi 0, %s167
      %s169 = sphi 0, %s167
      %s170 = sphi 0, %s169
      %s184 = sphi 0, %s170
      %s188 = sphi 0, %s188
      %s190 = sphi 0, %s188
      %s191 = sphi 0, %s190
      %s205 = sphi 0, %s191
      %s209 = sphi 0, %s209
      %s211 = sphi 0, %s209
      %s212 = sphi 0, %s211
      %s226 = sphi 0, %s212
      %s230 = sphi 0, %s230
      %s232 = sphi 0, %s230
      %s233 = sphi 0, %s232
      %s247 = sphi 0, %s233
      %s251 = sphi 0, %s251
      %s253 = sphi 0, %s251
      %s254 = sphi 0, %s253
      %s268 = sphi 0, %s254
      %s272 = sphi 0, %s272
      %s274 = sphi 0, %s272
      %s275 = sphi 0, %s274
      %s289 = sphi 0, %s275
      %s293 = sphi 0, %s293
      %s295 = sphi 0, %s293
      %s296 = sphi 0, %s295
      %s310 = sphi 0, %s296
      %s316 = sphi 0, %s318
      %s319 = sphi 0, %s316
      %s320 = sphi 0, %s319
      %s336 = sphi 0, %s320
    $region4: #{tpu_custom_call.1} parent=1 // loop_header_branch
      %26 = sbr.rel (%p24) target = $region8
    $region5: #{tpu_custom_call.1} parent=1 // loop_body
      %s28 = ssub.s32 %s23, 1
      %s29 = ssub.s32 %s23, 2
      %s30 = sadd.s32 %s23, 1
      %s31 = ssub.s32 %s23, %s30
      %p32 = scmp.eq.s32.totalorder %s31, 0
      %s34 = sadd.s32 %s33, 1
      %s35 = scalar_select %p32, %s33, %s34
      %p38 = pneg %p32
      %p39 = scmp.eq.s32.totalorder %s23, 1
      %p40 = por %p38, %p39
      %p41 = scmp.ne.s32.totalorder %s33, %s36
      %p42 = scmp.eq.s32.totalorder %s23, 0
      %p43 = por %p41, %p42
      %p44 = scmp.ne.s32.totalorder %s33, %s36
      %p45 = scmp.eq.s32.totalorder %s28, 1
      %p46 = por %p44, %p45
      %p47 = scmp.ne.s32.totalorder %s36, %s37
      %p48 = scmp.eq.s32.totalorder %s28, 0
      %p49 = por %p47, %p48
      %p50 = scmp.ne.s32.totalorder %s36, %s37
      %p51 = scmp.eq.s32.totalorder %s29, 1
      %p52 = por %p50, %p51
      %p54 = scmp.ne.s32.totalorder %s37, %s53
      %p55 = scmp.eq.s32.totalorder %s29, 0
      %p56 = por %p54, %p55
      %s57 = ssub.s32 %s23, %s30
      %p58 = scmp.eq.s32.totalorder %s57, 0
      %s60 = sadd.s32 %s59, 1
      %s61 = scalar_select %p58, %s59, %s60
      %p64 = pneg %p58
      %p65 = scmp.eq.s32.totalorder %s23, 1
      %p66 = por %p64, %p65
      %p67 = scmp.ne.s32.totalorder %s59, %s62
      %p68 = scmp.eq.s32.totalorder %s23, 0
      %p69 = por %p67, %p68
      %p70 = scmp.ne.s32.totalorder %s59, %s62
      %p71 = scmp.eq.s32.totalorder %s28, 1
      %p72 = por %p70, %p71
      %p73 = scmp.ne.s32.totalorder %s62, %s63
      %p74 = scmp.eq.s32.totalorder %s28, 0
      %p75 = por %p73, %p74
      %p76 = scmp.ne.s32.totalorder %s62, %s63
      %p77 = scmp.eq.s32.totalorder %s29, 1
      %p78 = por %p76, %p77
      %p80 = scmp.ne.s32.totalorder %s63, %s79
      %p81 = scmp.eq.s32.totalorder %s29, 0
      %p82 = por %p80, %p81
      %s84 = sadd.s32 %s83, 1
      %p87 = scmp.eq.s32.totalorder %s23, 1
      %p88 = scmp.ne.s32.totalorder %s83, %s85
      %p89 = scmp.eq.s32.totalorder %s23, 0
      %p90 = por %p88, %p89
      %p91 = scmp.ne.s32.totalorder %s83, %s85
      %p92 = scmp.eq.s32.totalorder %s28, 1
      %p93 = por %p91, %p92
      %p94 = scmp.ne.s32.totalorder %s85, %s86
      %p95 = scmp.eq.s32.totalorder %s28, 0
      %p96 = por %p94, %p95
      %p97 = scmp.ne.s32.totalorder %s85, %s86
      %p98 = scmp.eq.s32.totalorder %s29, 1
      %p99 = por %p97, %p98
      %p101 = scmp.ne.s32.totalorder %s86, %s100
      %p102 = scmp.eq.s32.totalorder %s29, 0
      %p103 = por %p101, %p102
      %s105 = sadd.s32 %s104, 1
      %p108 = scmp.eq.s32.totalorder %s23, 1
      %p109 = scmp.ne.s32.totalorder %s104, %s106
      %p110 = scmp.eq.s32.totalorder %s23, 0
      %p111 = por %p109, %p110
      %p112 = scmp.ne.s32.totalorder %s104, %s106
      %p113 = scmp.eq.s32.totalorder %s28, 1
      %p114 = por %p112, %p113
      %p115 = scmp.ne.s32.totalorder %s106, %s107
      %p116 = scmp.eq.s32.totalorder %s28, 0
      %p117 = por %p115, %p116
      %p118 = scmp.ne.s32.totalorder %s106, %s107
      %p119 = scmp.eq.s32.totalorder %s29, 1
      %p120 = por %p118, %p119
      %p122 = scmp.ne.s32.totalorder %s107, %s121
      %p123 = scmp.eq.s32.totalorder %s29, 0
      %p124 = por %p122, %p123
      %s126 = sadd.s32 %s125, 1
      %p129 = scmp.eq.s32.totalorder %s23, 1
      %p130 = scmp.ne.s32.totalorder %s125, %s127
      %p131 = scmp.eq.s32.totalorder %s23, 0
      %p132 = por %p130, %p131
      %p133 = scmp.ne.s32.totalorder %s125, %s127
      %p134 = scmp.eq.s32.totalorder %s28, 1
      %p135 = por %p133, %p134
      %p136 = scmp.ne.s32.totalorder %s127, %s128
      %p137 = scmp.eq.s32.totalorder %s28, 0
      %p138 = por %p136, %p137
      %p139 = scmp.ne.s32.totalorder %s127, %s128
      %p140 = scmp.eq.s32.totalorder %s29, 1
      %p141 = por %p139, %p140
      %p143 = scmp.ne.s32.totalorder %s128, %s142
      %p144 = scmp.eq.s32.totalorder %s29, 0
      %p145 = por %p143, %p144
      %s147 = sadd.s32 %s146, 1
      %p150 = scmp.eq.s32.totalorder %s23, 1
      %p151 = scmp.ne.s32.totalorder %s146, %s148
      %p152 = scmp.eq.s32.totalorder %s23, 0
      %p153 = por %p151, %p152
      %p154 = scmp.ne.s32.totalorder %s146, %s148
      %p155 = scmp.eq.s32.totalorder %s28, 1
      %p156 = por %p154, %p155
      %p157 = scmp.ne.s32.totalorder %s148, %s149
      %p158 = scmp.eq.s32.totalorder %s28, 0
      %p159 = por %p157, %p158
      %p160 = scmp.ne.s32.totalorder %s148, %s149
      %p161 = scmp.eq.s32.totalorder %s29, 1
      %p162 = por %p160, %p161
      %p164 = scmp.ne.s32.totalorder %s149, %s163
      %p165 = scmp.eq.s32.totalorder %s29, 0
      %p166 = por %p164, %p165
      %s168 = sadd.s32 %s167, 1
      %p171 = scmp.eq.s32.totalorder %s23, 1
      %p172 = scmp.ne.s32.totalorder %s167, %s169
      %p173 = scmp.eq.s32.totalorder %s23, 0
      %p174 = por %p172, %p173
      %p175 = scmp.ne.s32.totalorder %s167, %s169
      %p176 = scmp.eq.s32.totalorder %s28, 1
      %p177 = por %p175, %p176
      %p178 = scmp.ne.s32.totalorder %s169, %s170
      %p179 = scmp.eq.s32.totalorder %s28, 0
      %p180 = por %p178, %p179
      %p181 = scmp.ne.s32.totalorder %s169, %s170
      %p182 = scmp.eq.s32.totalorder %s29, 1
      %p183 = por %p181, %p182
      %p185 = scmp.ne.s32.totalorder %s170, %s184
      %p186 = scmp.eq.s32.totalorder %s29, 0
      %p187 = por %p185, %p186
      %s189 = sadd.s32 %s188, 1
      %p192 = scmp.eq.s32.totalorder %s23, 1
      %p193 = scmp.ne.s32.totalorder %s188, %s190
      %p194 = scmp.eq.s32.totalorder %s23, 0
      %p195 = por %p193, %p194
      %p196 = scmp.ne.s32.totalorder %s188, %s190
      %p197 = scmp.eq.s32.totalorder %s28, 1
      %p198 = por %p196, %p197
      %p199 = scmp.ne.s32.totalorder %s190, %s191
      %p200 = scmp.eq.s32.totalorder %s28, 0
      %p201 = por %p199, %p200
      %p202 = scmp.ne.s32.totalorder %s190, %s191
      %p203 = scmp.eq.s32.totalorder %s29, 1
      %p204 = por %p202, %p203
      %p206 = scmp.ne.s32.totalorder %s191, %s205
      %p207 = scmp.eq.s32.totalorder %s29, 0
      %p208 = por %p206, %p207
      %s210 = sadd.s32 %s209, 1
      %p213 = scmp.eq.s32.totalorder %s23, 1
      %p214 = scmp.ne.s32.totalorder %s209, %s211
      %p215 = scmp.eq.s32.totalorder %s23, 0
      %p216 = por %p214, %p215
      %p217 = scmp.ne.s32.totalorder %s209, %s211
      %p218 = scmp.eq.s32.totalorder %s28, 1
      %p219 = por %p217, %p218
      %p220 = scmp.ne.s32.totalorder %s211, %s212
      %p221 = scmp.eq.s32.totalorder %s28, 0
      %p222 = por %p220, %p221
      %p223 = scmp.ne.s32.totalorder %s211, %s212
      %p224 = scmp.eq.s32.totalorder %s29, 1
      %p225 = por %p223, %p224
      %p227 = scmp.ne.s32.totalorder %s212, %s226
      %p228 = scmp.eq.s32.totalorder %s29, 0
      %p229 = por %p227, %p228
      %s231 = sadd.s32 %s230, 1
      %p234 = scmp.eq.s32.totalorder %s23, 1
      %p235 = scmp.ne.s32.totalorder %s230, %s232
      %p236 = scmp.eq.s32.totalorder %s23, 0
      %p237 = por %p235, %p236
      %p238 = scmp.ne.s32.totalorder %s230, %s232
      %p239 = scmp.eq.s32.totalorder %s28, 1
      %p240 = por %p238, %p239
      %p241 = scmp.ne.s32.totalorder %s232, %s233
      %p242 = scmp.eq.s32.totalorder %s28, 0
      %p243 = por %p241, %p242
      %p244 = scmp.ne.s32.totalorder %s232, %s233
      %p245 = scmp.eq.s32.totalorder %s29, 1
      %p246 = por %p244, %p245
      %p248 = scmp.ne.s32.totalorder %s233, %s247
      %p249 = scmp.eq.s32.totalorder %s29, 0
      %p250 = por %p248, %p249
      %s252 = sadd.s32 %s251, 1
      %p255 = scmp.eq.s32.totalorder %s23, 1
      %p256 = scmp.ne.s32.totalorder %s251, %s253
      %p257 = scmp.eq.s32.totalorder %s23, 0
      %p258 = por %p256, %p257
      %p259 = scmp.ne.s32.totalorder %s251, %s253
      %p260 = scmp.eq.s32.totalorder %s28, 1
      %p261 = por %p259, %p260
      %p262 = scmp.ne.s32.totalorder %s253, %s254
      %p263 = scmp.eq.s32.totalorder %s28, 0
      %p264 = por %p262, %p263
      %p265 = scmp.ne.s32.totalorder %s253, %s254
      %p266 = scmp.eq.s32.totalorder %s29, 1
      %p267 = por %p265, %p266
      %p269 = scmp.ne.s32.totalorder %s254, %s268
      %p270 = scmp.eq.s32.totalorder %s29, 0
      %p271 = por %p269, %p270
      %s273 = sadd.s32 %s272, 1
      %p276 = scmp.eq.s32.totalorder %s23, 1
      %p277 = scmp.ne.s32.totalorder %s272, %s274
      %p278 = scmp.eq.s32.totalorder %s23, 0
      %p279 = por %p277, %p278
      %p280 = scmp.ne.s32.totalorder %s272, %s274
      %p281 = scmp.eq.s32.totalorder %s28, 1
      %p282 = por %p280, %p281
      %p283 = scmp.ne.s32.totalorder %s274, %s275
      %p284 = scmp.eq.s32.totalorder %s28, 0
      %p285 = por %p283, %p284
      %p286 = scmp.ne.s32.totalorder %s274, %s275
      %p287 = scmp.eq.s32.totalorder %s29, 1
      %p288 = por %p286, %p287
      %p290 = scmp.ne.s32.totalorder %s275, %s289
      %p291 = scmp.eq.s32.totalorder %s29, 0
      %p292 = por %p290, %p291
      %s294 = sadd.s32 %s293, 1
      %p297 = scmp.eq.s32.totalorder %s23, 1
      %p298 = scmp.ne.s32.totalorder %s293, %s295
      %p299 = scmp.eq.s32.totalorder %s23, 0
      %p300 = por %p298, %p299
      %p301 = scmp.ne.s32.totalorder %s293, %s295
      %p302 = scmp.eq.s32.totalorder %s28, 1
      %p303 = por %p301, %p302
      %p304 = scmp.ne.s32.totalorder %s295, %s296
      %p305 = scmp.eq.s32.totalorder %s28, 0
      %p306 = por %p304, %p305
      %p307 = scmp.ne.s32.totalorder %s295, %s296
      %p308 = scmp.eq.s32.totalorder %s29, 1
      %p309 = por %p307, %p308
      %p311 = scmp.ne.s32.totalorder %s296, %s310
      %p312 = scmp.eq.s32.totalorder %s29, 0
      %p313 = por %p311, %p312
      %s314 = ssub.s32 %s23, %s30
      %p315 = scmp.eq.s32.totalorder %s314, 0
      %s317 = sadd.s32 %s316, 1
      %s318 = scalar_select %p315, %s316, %s317
      %p321 = pneg %p315
      %p322 = scmp.eq.s32.totalorder %s23, 1
      %p323 = por %p321, %p322
      %p324 = scmp.ne.s32.totalorder %s316, %s319
      %p325 = scmp.eq.s32.totalorder %s23, 0
      %p326 = por %p324, %p325
      %p327 = scmp.ne.s32.totalorder %s316, %s319
      %p328 = scmp.eq.s32.totalorder %s28, 1
      %p329 = por %p327, %p328
      %p330 = scmp.ne.s32.totalorder %s319, %s320
      %p331 = scmp.eq.s32.totalorder %s28, 0
      %p332 = por %p330, %p331
      %p333 = scmp.ne.s32.totalorder %s319, %s320
      %p334 = scmp.eq.s32.totalorder %s29, 1
      %p335 = por %p333, %p334
      %p337 = scmp.ne.s32.totalorder %s320, %s336
      %p338 = scmp.eq.s32.totalorder %s29, 0
      %p339 = por %p337, %p338
      %p340 = scmp.le.s32.totalorder 1, %s23
      %p341 = scmp.lt.s32.totalorder %s23, 3
      %p342 = pnand %p340, %p341
      %p343 = pneg %p342
      // Predicated region
      $region9: #{tpu_custom_call.1} parent=5 // pred_check
        _
      $region10: #{tpu_custom_call.1} parent=5 // pred_check_branch
        %345 = sbr.rel (%p342) target = $region12
      $region11: #{tpu_custom_call.1} parent=5 // pred_region
        %s346 = ssub.s32 %s23, 1
        // Predicated region
        $region13: #{tpu_custom_call.1} parent=11 // pred_check
          %p347 = pneg %p96
        $region14: #{tpu_custom_call.1} parent=11 // pred_check_branch
          %349 = sbr.rel (%p347) target = $region16
        $region15: #{tpu_custom_call.1} parent=11 // pred_region
          _
        $region16: #{tpu_custom_call.1} parent=11 // pred_fallthru
          _
        // Predicated region
        $region17: #{tpu_custom_call.1} parent=11 // pred_check
          %p350 = pneg %p117
        $region18: #{tpu_custom_call.1} parent=11 // pred_check_branch
          %352 = sbr.rel (%p350) target = $region20
        $region19: #{tpu_custom_call.1} parent=11 // pred_region
          _
        $region20: #{tpu_custom_call.1} parent=11 // pred_fallthru
          _
        // Predicated region
        $region21: #{tpu_custom_call.1} parent=11 // pred_check
          %p353 = pneg %p138
        $region22: #{tpu_custom_call.1} parent=11 // pred_check_branch
          %355 = sbr.rel (%p353) target = $region24
        $region23: #{tpu_custom_call.1} parent=11 // pred_region
          _
        $region24: #{tpu_custom_call.1} parent=11 // pred_fallthru
          _
        // Predicated region
        $region25: #{tpu_custom_call.1} parent=11 // pred_check
          %p356 = pneg %p159
        $region26: #{tpu_custom_call.1} parent=11 // pred_check_branch
          %358 = sbr.rel (%p356) target = $region28
        $region27: #{tpu_custom_call.1} parent=11 // pred_region
          _
        $region28: #{tpu_custom_call.1} parent=11 // pred_fallthru
          _
        // Predicated region
        $region29: #{tpu_custom_call.1} parent=11 // pred_check
          %p359 = pneg %p180
        $region30: #{tpu_custom_call.1} parent=11 // pred_check_branch
          %361 = sbr.rel (%p359) target = $region32
        $region31: #{tpu_custom_call.1} parent=11 // pred_region
          %s363 = ssub.s32 1024, 1024
          %364 = vsyncadd [#allocation3], %s363
          %s365 = sshll.u32 [#allocation2], 4
          %s366 = int_to_ptr.vmem [resolvable:$true] %s365
          %371 = dma.hbm_to_vmem [thread:$0]  %s6, 1024, %s366, [#allocation3], 64, 64, 4
        $region32: #{tpu_custom_call.1} parent=11 // pred_fallthru
          _
        // Predicated region
        $region33: #{tpu_custom_call.1} parent=11 // pred_check
          %p372 = pneg %p201
        $region34: #{tpu_custom_call.1} parent=11 // pred_check_branch
          %374 = sbr.rel (%p372) target = $region36
        $region35: #{tpu_custom_call.1} parent=11 // pred_region
          _
        $region36: #{tpu_custom_call.1} parent=11 // pred_fallthru
          _
        // Predicated region
        $region37: #{tpu_custom_call.1} parent=11 // pred_check
          %p375 = pneg %p222
        $region38: #{tpu_custom_call.1} parent=11 // pred_check_branch
          %377 = sbr.rel (%p375) target = $region40
        $region39: #{tpu_custom_call.1} parent=11 // pred_region
          _
        $region40: #{tpu_custom_call.1} parent=11 // pred_fallthru
          _
        // Predicated region
        $region41: #{tpu_custom_call.1} parent=11 // pred_check
          %p378 = pneg %p243
        $region42: #{tpu_custom_call.1} parent=11 // pred_check_branch
          %380 = sbr.rel (%p378) target = $region44
        $region43: #{tpu_custom_call.1} parent=11 // pred_region
          _
        $region44: #{tpu_custom_call.1} parent=11 // pred_fallthru
          _
        // Predicated region
        $region45: #{tpu_custom_call.1} parent=11 // pred_check
          %p381 = pneg %p264
        $region46: #{tpu_custom_call.1} parent=11 // pred_check_branch
          %383 = sbr.rel (%p381) target = $region48
        $region47: #{tpu_custom_call.1} parent=11 // pred_region
          _
        $region48: #{tpu_custom_call.1} parent=11 // pred_fallthru
          _
        // Predicated region
        $region49: #{tpu_custom_call.1} parent=11 // pred_check
          %p384 = pneg %p285
        $region50: #{tpu_custom_call.1} parent=11 // pred_check_branch
          %386 = sbr.rel (%p384) target = $region52
        $region51: #{tpu_custom_call.1} parent=11 // pred_region
          _
        $region52: #{tpu_custom_call.1} parent=11 // pred_fallthru
          _
        // Predicated region
        $region53: #{tpu_custom_call.1} parent=11 // pred_check
          %p387 = pneg %p306
        $region54: #{tpu_custom_call.1} parent=11 // pred_check_branch
          %389 = sbr.rel (%p387) target = $region56
        $region55: #{tpu_custom_call.1} parent=11 // pred_region
          _
        $region56: #{tpu_custom_call.1} parent=11 // pred_fallthru
          _
      $region12: #{tpu_custom_call.1} parent=5 // pred_fallthru
        _
      %p390 = scmp.lt.s32.totalorder %s23, 2
      // Predicated region
      $region57: #{tpu_custom_call.1} parent=5 // pred_check
        %p391 = pneg %p390
      $region58: #{tpu_custom_call.1} parent=5 // pred_check_branch
        %393 = sbr.rel (%p391) target = $region60
      $region59: #{tpu_custom_call.1} parent=5 // pred_region
        // Predicated region
        $region61: #{tpu_custom_call.1} parent=59 // pred_check
          %p394 = pneg %p43
        $region62: #{tpu_custom_call.1} parent=59 // pred_check_branch
          %396 = sbr.rel (%p394) target = $region64
        $region63: #{tpu_custom_call.1} parent=59 // pred_region
          %p397 = scmp.lt.s32.totalorder %s23, 1
          %s398 = scalar_select %p397, %s23, 1
          %s399 = smul.addr %s398, 8
          %s400 = smul.addr %s399, 4
          %s401 = scalar_lea.vmem %s0, %s400
        $region64: #{tpu_custom_call.1} parent=59 // pred_fallthru
          _
        // Predicated region
        $region65: #{tpu_custom_call.1} parent=59 // pred_check
          %p402 = pneg %p69
        $region66: #{tpu_custom_call.1} parent=59 // pred_check_branch
          %404 = sbr.rel (%p402) target = $region68
        $region67: #{tpu_custom_call.1} parent=59 // pred_region
          %p405 = scmp.lt.s32.totalorder %s23, 1
          %s406 = scalar_select %p405, %s23, 1
          %s407 = smul.addr %s406, 8
          %s408 = smul.addr %s407, 4
          %s409 = scalar_lea.vmem %s1, %s408
        $region68: #{tpu_custom_call.1} parent=59 // pred_fallthru
          _
      $region60: #{tpu_custom_call.1} parent=5 // pred_fallthru
        _
      %p410 = scmp.le.s32.totalorder 1, %s23
      %p411 = scmp.lt.s32.totalorder %s23, 3
      %p412 = pnand %p410, %p411
      %p413 = pneg %p412
      // Predicated region
      $region69: #{tpu_custom_call.1} parent=5 // pred_check
        _
      $region70: #{tpu_custom_call.1} parent=5 // pred_check_branch
        %415 = sbr.rel (%p412) target = $region72
      $region71: #{tpu_custom_call.1} parent=5 // pred_region
        %s416 = ssub.s32 %s23, 1
        // Predicated region
        $region73: #{tpu_custom_call.1} parent=71 // pred_check
          %p417 = pneg %p180
        $region74: #{tpu_custom_call.1} parent=71 // pred_check_branch
          %419 = sbr.rel (%p417) target = $region76
        $region75: #{tpu_custom_call.1} parent=71 // pred_region
          %420 = dma.done [#allocation3], 1024
        $region76: #{tpu_custom_call.1} parent=71 // pred_fallthru
          _
        %p421 = scmp.lt.s32.totalorder %s28, 1
        %s422 = scalar_select %p421, %s28, 1
        %s423 = smul.addr %s422, 8
        %s424 = smul.addr %s423, 4
        %s425 = scalar_lea.vmem %s0, %s424
        %p426 = pneg %p49
        %p427 = pneg %p46
        %p428 = scmp.lt.s32.totalorder %s28, 1
        %s429 = scalar_select %p428, %s28, 1
        %s430 = smul.addr %s429, 8
        %s431 = smul.addr %s430, 4
        %s432 = scalar_lea.vmem %s1, %s431
        %p433 = pneg %p75
        %p434 = pneg %p72
        %p435 = pneg %p96
        %p436 = pneg %p93
        %p437 = pneg %p117
        %p438 = pneg %p114
        %p439 = pneg %p138
        %p440 = pneg %p135
        %p441 = pneg %p159
        %p442 = pneg %p156
        %p443 = pneg %p180
        %p444 = pneg %p177
        %p445 = pneg %p201
        %p446 = pneg %p198
        %p447 = pneg %p222
        %p448 = pneg %p219
        %p449 = pneg %p243
        %p450 = pneg %p240
        %p451 = pneg %p264
        %p452 = pneg %p261
        %p453 = pneg %p285
        %p454 = pneg %p282
        %p455 = pneg %p306
        %p456 = pneg %p303
        %p457 = pneg %p332
        %p458 = pneg %p329
        %s459 = sand.u32 %s319, 1
        %s460 = scalar_lea.sflag [#allocation4], %s459
        %s461 = sand.u32 %s319, 1
        %s462 = smul.addr %s461, 64
        %s463 = scalar_lea.vmem [#allocation5], %s462
        %p464 = scmp.lt.s32.totalorder %s28, 1
        %s465 = scalar_select %p464, %s28, 1
        %s466 = smul.addr %s465, 8
        %s467 = smul.addr %s466, 4
        %s468 = scalar_lea.vmem %s0, %s467
        %p469 = scmp.lt.s32.totalorder %s28, 1
        %s470 = scalar_select %p469, %s28, 1
        %s471 = smul.addr %s470, 8
        %s472 = smul.addr %s471, 4
        %s473 = scalar_lea.vmem %s1, %s472
        %v475 = vld [vmem:[%s12] sm:$0xff]
        %v476 = vld [vmem:[%s12 + $0x8] sm:$0xff]
        %v477 = vld [vmem:[%s12 + $0x10] sm:$0xff]
        %v478 = vld [vmem:[%s12 + $0x18] sm:$0xff]
        %v479 = vld [vmem:[%s12 + $0x20] sm:$0xff]
        %v480 = vld [vmem:[%s12 + $0x28] sm:$0xff]
        %v481 = vld [vmem:[%s12 + $0x30] sm:$0xff]
        %v482 = vld [vmem:[%s12 + $0x38] sm:$0xff]
        %v483 = vld [vmem:[%s12 + $0x40] sm:$0xff]
        %v484 = vld [vmem:[%s12 + $0x48] sm:$0xff]
        %v485 = vld [vmem:[%s12 + $0x50] sm:$0xff]
        %v486 = vld [vmem:[%s12 + $0x58] sm:$0xff]
        %v487 = vld [vmem:[%s12 + $0x60] sm:$0xff]
        %v488 = vld [vmem:[%s12 + $0x68] sm:$0xff]
        %v489 = vld [vmem:[%s12 + $0x70] sm:$0xff]
        %v490 = vld [vmem:[%s12 + $0x78] sm:$0xff]
        %v491 = vld [vmem:[%s468] sm:$0xf]
        %v492 = vld [vmem:[%s468 + $0x4] sm:$0xf]
        %v493 = vld [vmem:[%s468 + $0x8] sm:$0xf]
        %v494 = vld [vmem:[%s468 + $0xc] sm:$0xf]
        %v495 = vld [vmem:[%s468 + $0x10] sm:$0xf]
        %v496 = vld [vmem:[%s468 + $0x14] sm:$0xf]
        %v497 = vld [vmem:[%s468 + $0x18] sm:$0xf]
        %v498 = vld [vmem:[%s468 + $0x1c] sm:$0xf]
        %v499 = vld [vmem:[%s2] sm:$0xf]
        %v500 = vld [vmem:[%s2 + $0x4] sm:$0xf]
        %v501 = vld [vmem:[%s2 + $0x8] sm:$0xf]
        %v502 = vld [vmem:[%s2 + $0xc] sm:$0xf]
        %v503 = vld [vmem:[%s2 + $0x10] sm:$0x3]
        %v504 = vld [vmem:[%s3] sm:$0x1]
        %v506 = vlaneseq
        %v507 = vshrl.u32 %v506, 7
        %v508 = vsub.s32 0, %v507
        %v509 = vrot.slane %v504, %v508
        %v519 = vunpack.c.l.b16 %v491
        %v520 = vunpack.c.l.b16 %v492
        %v521 = vunpack.c.l.b16 %v493
        %v522 = vunpack.c.l.b16 %v494
        %v523 = vunpack.c.l.b16 %v495
        %v524 = vunpack.c.l.b16 %v496
        %v525 = vunpack.c.l.b16 %v497
        %v526 = vunpack.c.l.b16 %v498
        %v527 = vpack.c.b16 %v520, %v519
        %v528 = vpack.c.b16 %v522, %v521
        %v529 = vpack.c.b16 %v524, %v523
        %v530 = vpack.c.b16 %v526, %v525
        %v536 = vunpack.c.l.b16 %v499
        %v537 = vunpack.c.l.b16 %v500
        %v538 = vunpack.c.l.b16 %v501
        %v539 = vunpack.c.l.b16 %v502
        %v540 = vunpack.c.l.b16 %v503
        %v541 = vpack.c.b16 %v537, %v536
        %v542 = vpack.c.b16 %v539, %v538
        %v543 = vpack.c.b16 %v540, %v540
        %vm546 = vcmask 293888
        %v548 = vsel %vm546, %v527, 0
        %v551 = vsel %vm546, %v528, 0
        %v554 = vsel %vm546, %v529, 0
        %v557 = vsel %vm546, %v530, 0
        %vm559 = vcmask 1041408
        %v561 = vsel %vm559, %v543, 0
        %563 = vmatprep.subr.bf16.mxu0 0
        %564 = vmatpush1.bf16.msra.mxu0 0
        %565 = vmatprep.subr.bf16.mxu0 0
        %566 = vmatpush1.bf16.msra.mxu0 0
        %567 = vmatprep.subr.bf16.mxu0 0
        %568 = vmatpush1.bf16.msra.mxu0 0
        %569 = vmatprep.subr.bf16.mxu0 0
        %570 = vmatpush1.bf16.msra.mxu0 0
        %571 = vmatprep.subr.bf16.mxu0 0
        %572 = vmatpush1.bf16.msra.mxu0 0
        %573 = vmatprep.subr.bf16.mxu0 0
        %574 = vmatpush1.bf16.msra.mxu0 %v561
        %575 = vmatprep.subr.bf16.mxu0 0
        %576 = vmatpush1.bf16.msra.mxu0 %v542
        %577 = vmatprep.subr.bf16.mxu0 0
        %578 = vmatpush1.bf16.msra.mxu0 %v541
        %579 = vmatprep.subr.bf16.mxu0 0
        %580 = vmatpush2.bf16.msra.mxu0 0
        %581 = vmatprep.subr.bf16.mxu0 0
        %582 = vmatpush2.bf16.msra.mxu0 0
        %583 = vmatprep.subr.bf16.mxu0 0
        %584 = vmatpush2.bf16.msra.mxu0 0
        %585 = vmatprep.subr.bf16.mxu0 0
        %586 = vmatpush2.bf16.msra.mxu0 0
        %587 = vmatprep.subr.bf16.mxu0 0
        %588 = vmatpush2.bf16.msra.mxu0 0
        %589 = vmatprep.subr.bf16.mxu0 0
        %590 = vmatpush2.bf16.msra.mxu0 0
        %591 = vmatprep.subr.bf16.mxu0 0
        %592 = vmatpush2.bf16.msra.mxu0 0
        %593 = vmatprep.subr.bf16.mxu0 0
        %594 = vmatpush2.bf16.msra.mxu0 0
        %595 = vmatprep.mubr.bf16.mxu0 0
        %596 = vmatmul.mubr.bf16.gmra.mxu0 %v548
        %v597 = vpop.f32.mrf.mxu0
        %v598 = vadd.f32 %v509, %v597
        %v599 = vpop.f32.mrf.mxu0
        %v600 = vpop.f32.mrf.mxu0
        %v601 = vadd.f32 %v509, %v600
        %v602 = vpop.f32.mrf.mxu0
        %603 = vmatprep.mubr.bf16.mxu0 0
        %604 = vmatmul.mubr.bf16.gmra.mxu0 %v551
        %v605 = vpop.f32.mrf.mxu0
        %v606 = vadd.f32 %v509, %v605
        %v607 = vpop.f32.mrf.mxu0
        %v608 = vpop.f32.mrf.mxu0
        %v609 = vadd.f32 %v509, %v608
        %v610 = vpop.f32.mrf.mxu0
        %611 = vmatprep.mubr.bf16.mxu0 0
        %612 = vmatmul.mubr.bf16.gmra.mxu0 %v554
        %v613 = vpop.f32.mrf.mxu0
        %v614 = vadd.f32 %v509, %v613
        %v615 = vpop.f32.mrf.mxu0
        %v616 = vpop.f32.mrf.mxu0
        %v617 = vadd.f32 %v509, %v616
        %v618 = vpop.f32.mrf.mxu0
        %619 = vmatprep.mubr.bf16.mxu0 0
        %620 = vmatmul.mubr.bf16.gmra.mxu0 %v557
        %v621 = vpop.f32.mrf.mxu0
        %v622 = vadd.f32 %v509, %v621
        %v623 = vpop.f32.mrf.mxu0
        %v624 = vpop.f32.mrf.mxu0
        %v625 = vadd.f32 %v509, %v624
        %v626 = vpop.f32.mrf.mxu0
        %627 = vdwg.mxu0
        %v628 = vld [vmem:[%s4] sm:$0x1]
        %v629 = vld [vmem:[%s5] sm:$0x1]
        %v630 = vadd.f32 %v598, %v601
        %v631 = vadd.f32 %v630, %v606
        %v632 = vadd.f32 %v631, %v609
        %v633 = vadd.f32 %v632, %v614
        %v634 = vadd.f32 %v633, %v617
        %v635 = vadd.f32 %v634, %v622
        %v636 = vadd.f32 %v635, %v625
        %v637 = vrot.slane %v636, 4
        %v638 = vadd.f32 %v636, %v637
        %v639 = vrot.slane %v638, 2
        %v640 = vadd.f32 %v638, %v639
        %v641 = vrot.slane %v640, 1
        %v642 = vadd.f32 %v640, %v641
        %643 = vmatprep.subr.mxu0 0.0
        %644 = vmatpush1.msra.mxu0 %v490
        %645 = vmatprep.subr.mxu0 0.0
        %646 = vmatpush1.msra.mxu0 %v489
        %647 = vmatprep.subr.mxu0 0.0
        %648 = vmatpush1.msra.mxu0 %v488
        %649 = vmatprep.subr.mxu0 0.0
        %650 = vmatpush1.msra.mxu0 %v487
        %651 = vmatprep.subr.mxu0 0.0
        %652 = vmatpush1.msra.mxu0 %v486
        %653 = vmatprep.subr.mxu0 0.0
        %654 = vmatpush1.msra.mxu0 %v485
        %655 = vmatprep.subr.mxu0 0.0
        %656 = vmatpush1.msra.mxu0 %v484
        %657 = vmatprep.subr.mxu0 0.0
        %658 = vmatpush1.msra.mxu0 %v483
        %659 = vmatprep.subr.mxu0 0.0
        %660 = vmatpush1.msra.mxu0 %v482
        %661 = vmatprep.subr.mxu0 0.0
        %662 = vmatpush1.msra.mxu0 %v481
        %663 = vmatprep.subr.mxu0 0.0
        %664 = vmatpush1.msra.mxu0 %v480
        %665 = vmatprep.subr.mxu0 0.0
        %666 = vmatpush1.msra.mxu0 %v479
        %667 = vmatprep.subr.mxu0 0.0
        %668 = vmatpush1.msra.mxu0 %v478
        %669 = vmatprep.subr.mxu0 0.0
        %670 = vmatpush1.msra.mxu0 %v477
        %671 = vmatprep.subr.mxu0 0.0
        %672 = vmatpush1.msra.mxu0 %v476
        %673 = vmatprep.subr.mxu0 0.0
        %674 = vmatpush1.msra.mxu0 %v475
        %675 = vmatprep.subr.mxu0 0.0
        %676 = vmatpush2.msra.mxu0 0.0
        %677 = vmatprep.subr.mxu0 0.0
        %678 = vmatpush2.msra.mxu0 0.0
        %679 = vmatprep.subr.mxu0 0.0
        %680 = vmatpush2.msra.mxu0 0.0
        %681 = vmatprep.subr.mxu0 0.0
        %682 = vmatpush2.msra.mxu0 0.0
        %683 = vmatprep.subr.mxu0 0.0
        %684 = vmatpush2.msra.mxu0 0.0
        %685 = vmatprep.subr.mxu0 0.0
        %686 = vmatpush2.msra.mxu0 0.0
        %687 = vmatprep.subr.mxu0 0.0
        %688 = vmatpush2.msra.mxu0 0.0
        %689 = vmatprep.subr.mxu0 0.0
        %690 = vmatpush2.msra.mxu0 0.0
        %691 = vmatprep.subr.mxu0 0.0
        %692 = vmatpush2.msra.mxu0 0.0
        %693 = vmatprep.subr.mxu0 0.0
        %694 = vmatpush2.msra.mxu0 0.0
        %695 = vmatprep.subr.mxu0 0.0
        %696 = vmatpush2.msra.mxu0 0.0
        %697 = vmatprep.subr.mxu0 0.0
        %698 = vmatpush2.msra.mxu0 0.0
        %699 = vmatprep.subr.mxu0 0.0
        %700 = vmatpush2.msra.mxu0 0.0
        %701 = vmatprep.subr.mxu0 0.0
        %702 = vmatpush2.msra.mxu0 0.0
        %703 = vmatprep.subr.mxu0 0.0
        %704 = vmatpush2.msra.mxu0 0.0
        %705 = vmatprep.subr.mxu0 0.0
        %706 = vmatpush2.msra.mxu0 0.0
        %707 = vmatprep.mubr.f32.mxu0 0.0
        %708 = vmatmul.mubr.f32.gmra.mxu0 %v642
        %v709 = vpop.f32.mrf.mxu0
        %v710 = vadd.f32 0.0, %v709
        %v711 = vpop.f32.mrf.mxu0
        %712 = vdwg.mxu0
        %v713 = vmul.f32 %v710, 0.015625
        %v714 = vlaneseq
        %v715 = vshrl.u32 %v714, 7
        %v716 = vsub.s32 0, %v715
        %v717 = vrot.slane %v713, %v716
        %v718 = vsub.f32 %v598, %v717
        %v719 = vsub.f32 %v601, %v717
        %v720 = vsub.f32 %v606, %v717
        %v721 = vsub.f32 %v609, %v717
        %v722 = vsub.f32 %v614, %v717
        %v723 = vsub.f32 %v617, %v717
        %v724 = vsub.f32 %v622, %v717
        %v725 = vsub.f32 %v625, %v717
        %v726 = vmul.f32 %v718, %v718
        %v727 = vmul.f32 %v719, %v719
        %v728 = vmul.f32 %v720, %v720
        %v729 = vmul.f32 %v721, %v721
        %v730 = vmul.f32 %v722, %v722
        %v731 = vmul.f32 %v723, %v723
        %v732 = vmul.f32 %v724, %v724
        %v733 = vmul.f32 %v725, %v725
        %v734 = vadd.f32 %v726, %v727
        %v735 = vadd.f32 %v734, %v728
        %v736 = vadd.f32 %v735, %v729
        %v737 = vadd.f32 %v736, %v730
        %v738 = vadd.f32 %v737, %v731
        %v739 = vadd.f32 %v738, %v732
        %v740 = vadd.f32 %v739, %v733
        %v741 = vrot.slane %v740, 4
        %v742 = vadd.f32 %v740, %v741
        %v743 = vrot.slane %v742, 2
        %v744 = vadd.f32 %v742, %v743
        %v745 = vrot.slane %v744, 1
        %v746 = vadd.f32 %v744, %v745
        %747 = vmatprep.subr.mxu0 0.0
        %748 = vmatpush1.msra.mxu0 %v490
        %749 = vmatprep.subr.mxu0 0.0
        %750 = vmatpush1.msra.mxu0 %v489
        %751 = vmatprep.subr.mxu0 0.0
        %752 = vmatpush1.msra.mxu0 %v488
        %753 = vmatprep.subr.mxu0 0.0
        %754 = vmatpush1.msra.mxu0 %v487
        %755 = vmatprep.subr.mxu0 0.0
        %756 = vmatpush1.msra.mxu0 %v486
        %757 = vmatprep.subr.mxu0 0.0
        %758 = vmatpush1.msra.mxu0 %v485
        %759 = vmatprep.subr.mxu0 0.0
        %760 = vmatpush1.msra.mxu0 %v484
        %761 = vmatprep.subr.mxu0 0.0
        %762 = vmatpush1.msra.mxu0 %v483
        %763 = vmatprep.subr.mxu0 0.0
        %764 = vmatpush1.msra.mxu0 %v482
        %765 = vmatprep.subr.mxu0 0.0
        %766 = vmatpush1.msra.mxu0 %v481
        %767 = vmatprep.subr.mxu0 0.0
        %768 = vmatpush1.msra.mxu0 %v480
        %769 = vmatprep.subr.mxu0 0.0
        %770 = vmatpush1.msra.mxu0 %v479
        %771 = vmatprep.subr.mxu0 0.0
        %772 = vmatpush1.msra.mxu0 %v478
        %773 = vmatprep.subr.mxu0 0.0
        %774 = vmatpush1.msra.mxu0 %v477
        %775 = vmatprep.subr.mxu0 0.0
        %776 = vmatpush1.msra.mxu0 %v476
        %777 = vmatprep.subr.mxu0 0.0
        %778 = vmatpush1.msra.mxu0 %v475
        %779 = vmatprep.subr.mxu0 0.0
        %780 = vmatpush2.msra.mxu0 0.0
        %781 = vmatprep.subr.mxu0 0.0
        %782 = vmatpush2.msra.mxu0 0.0
        %783 = vmatprep.subr.mxu0 0.0
        %784 = vmatpush2.msra.mxu0 0.0
        %785 = vmatprep.subr.mxu0 0.0
        %786 = vmatpush2.msra.mxu0 0.0
        %787 = vmatprep.subr.mxu0 0.0
        %788 = vmatpush2.msra.mxu0 0.0
        %789 = vmatprep.subr.mxu0 0.0
        %790 = vmatpush2.msra.mxu0 0.0
        %791 = vmatprep.subr.mxu0 0.0
        %792 = vmatpush2.msra.mxu0 0.0
        %793 = vmatprep.subr.mxu0 0.0
        %794 = vmatpush2.msra.mxu0 0.0
        %795 = vmatprep.subr.mxu0 0.0
        %796 = vmatpush2.msra.mxu0 0.0
        %797 = vmatprep.subr.mxu0 0.0
        %798 = vmatpush2.msra.mxu0 0.0
        %799 = vmatprep.subr.mxu0 0.0
        %800 = vmatpush2.msra.mxu0 0.0
        %801 = vmatprep.subr.mxu0 0.0
        %802 = vmatpush2.msra.mxu0 0.0
        %803 = vmatprep.subr.mxu0 0.0
        %804 = vmatpush2.msra.mxu0 0.0
        %805 = vmatprep.subr.mxu0 0.0
        %806 = vmatpush2.msra.mxu0 0.0
        %807 = vmatprep.subr.mxu0 0.0
        %808 = vmatpush2.msra.mxu0 0.0
        %809 = vmatprep.subr.mxu0 0.0
        %810 = vmatpush2.msra.mxu0 0.0
        %811 = vmatprep.mubr.f32.mxu0 0.0
        %812 = vmatmul.mubr.f32.gmra.mxu0 %v746
        %v813 = vpop.f32.mrf.mxu0
        %v814 = vadd.f32 0.0, %v813
        %v815 = vpop.f32.mrf.mxu0
        %816 = vdwg.mxu0
        %v817 = vmul.f32 %v814, 0.015625
        %v818 = vadd.f32 %v817, 1e-05
        %v819 = vrsqrt.pop %v818
        %v820 = vlaneseq
        %v821 = vshrl.u32 %v820, 7
        %v822 = vsub.s32 0, %v821
        %v823 = vrot.slane %v819, %v822
        %v824 = vmul.f32 %v718, %v823
        %v825 = vmul.f32 %v719, %v823
        %v826 = vmul.f32 %v720, %v823
        %v827 = vmul.f32 %v721, %v823
        %v828 = vmul.f32 %v722, %v823
        %v829 = vmul.f32 %v723, %v823
        %v830 = vmul.f32 %v724, %v823
        %v831 = vmul.f32 %v725, %v823
        %v833 = vlaneseq
        %v834 = vshrl.u32 %v833, 7
        %v835 = vsub.s32 0, %v834
        %v836 = vrot.slane %v628, %v835
        %v838 = vmul.f32 %v824, %v836
        %v839 = vmul.f32 %v825, %v836
        %v840 = vmul.f32 %v826, %v836
        %v841 = vmul.f32 %v827, %v836
        %v842 = vmul.f32 %v828, %v836
        %v843 = vmul.f32 %v829, %v836
        %v844 = vmul.f32 %v830, %v836
        %v845 = vmul.f32 %v831, %v836
        %v847 = vlaneseq
        %v848 = vshrl.u32 %v847, 7
        %v849 = vsub.s32 0, %v848
        %v850 = vrot.slane %v629, %v849
        %v852 = vadd.f32 %v838, %v850
        %v853 = vadd.f32 %v839, %v850
        %v854 = vadd.f32 %v840, %v850
        %v855 = vadd.f32 %v841, %v850
        %v856 = vadd.f32 %v842, %v850
        %v857 = vadd.f32 %v843, %v850
        %v858 = vadd.f32 %v844, %v850
        %v859 = vadd.f32 %v845, %v850
        %vm860 = vcmp.gt.f32.partialorder %v852, 0.0
        %vm861 = vcmp.gt.f32.partialorder %v853, 0.0
        %vm862 = vcmp.gt.f32.partialorder %v854, 0.0
        %vm863 = vcmp.gt.f32.partialorder %v855, 0.0
        %vm864 = vcmp.gt.f32.partialorder %v856, 0.0
        %vm865 = vcmp.gt.f32.partialorder %v857, 0.0
        %vm866 = vcmp.gt.f32.partialorder %v858, 0.0
        %vm867 = vcmp.gt.f32.partialorder %v859, 0.0
        %v868 = vmul.f32 %v852, 0.01
        %v869 = vmul.f32 %v853, 0.01
        %v870 = vmul.f32 %v854, 0.01
        %v871 = vmul.f32 %v855, 0.01
        %v872 = vmul.f32 %v856, 0.01
        %v873 = vmul.f32 %v857, 0.01
        %v874 = vmul.f32 %v858, 0.01
        %v875 = vmul.f32 %v859, 0.01
        %v876 = vsel %vm860, %v852, %v868
        %v877 = vsel %vm861, %v853, %v869
        %v878 = vsel %vm862, %v854, %v870
        %v879 = vsel %vm863, %v855, %v871
        %v880 = vsel %vm864, %v856, %v872
        %v881 = vsel %vm865, %v857, %v873
        %v882 = vsel %vm866, %v858, %v874
        %v883 = vsel %vm867, %v859, %v875
        %v884 = vpack.c.bf16 %v877, %v876
        %v885 = vpack.c.bf16 %v879, %v878
        %v886 = vpack.c.bf16 %v881, %v880
        %v887 = vpack.c.bf16 %v883, %v882
        %v888 = vld [vmem:[#allocation2] sm:$0xf]
        %v889 = vld [vmem:[#allocation2 + $0x4] sm:$0xf]
        %v890 = vld [vmem:[#allocation2 + $0x8] sm:$0xf]
        %v891 = vld [vmem:[#allocation2 + $0xc] sm:$0xf]
        %v892 = vld [vmem:[#allocation2 + $0x10] sm:$0xf]
        %v893 = vld [vmem:[#allocation2 + $0x14] sm:$0xf]
        %v894 = vld [vmem:[#allocation2 + $0x18] sm:$0xf]
        %v895 = vld [vmem:[#allocation2 + $0x1c] sm:$0xf]
        %v896 = vld [vmem:[#allocation2 + $0x20] sm:$0xf]
        %v897 = vld [vmem:[#allocation2 + $0x24] sm:$0xf]
        %v898 = vld [vmem:[#allocation2 + $0x28] sm:$0xf]
        %v899 = vld [vmem:[#allocation2 + $0x2c] sm:$0xf]
        %v900 = vld [vmem:[#allocation2 + $0x30] sm:$0xf]
        %v901 = vld [vmem:[#allocation2 + $0x34] sm:$0xf]
        %v902 = vld [vmem:[#allocation2 + $0x38] sm:$0xf]
        %v903 = vld [vmem:[#allocation2 + $0x3c] sm:$0xf]
        %v904 = vld [vmem:[%s7] sm:$0x1]
        %v906 = vlaneseq
        %v907 = vshrl.u32 %v906, 7
        %v908 = vsub.s32 0, %v907
        %v909 = vrot.slane %v904, %v908
        %v927 = vunpack.c.l.b16 %v888
        %v928 = vunpack.c.l.b16 %v889
        %v929 = vunpack.c.l.b16 %v890
        %v930 = vunpack.c.l.b16 %v891
        %v931 = vunpack.c.l.b16 %v892
        %v932 = vunpack.c.l.b16 %v893
        %v933 = vunpack.c.l.b16 %v894
        %v934 = vunpack.c.l.b16 %v895
        %v935 = vunpack.c.l.b16 %v896
        %v936 = vunpack.c.l.b16 %v897
        %v937 = vunpack.c.l.b16 %v898
        %v938 = vunpack.c.l.b16 %v899
        %v939 = vunpack.c.l.b16 %v900
        %v940 = vunpack.c.l.b16 %v901
        %v941 = vunpack.c.l.b16 %v902
        %v942 = vunpack.c.l.b16 %v903
        %v943 = vpack.c.b16 %v928, %v927
        %v944 = vpack.c.b16 %v930, %v929
        %v945 = vpack.c.b16 %v932, %v931
        %v946 = vpack.c.b16 %v934, %v933
        %v947 = vpack.c.b16 %v936, %v935
        %v948 = vpack.c.b16 %v938, %v937
        %v949 = vpack.c.b16 %v940, %v939
        %v950 = vpack.c.b16 %v942, %v941
        %959 = vmatprep.subr.bf16.mxu0 0
        %960 = vmatpush1.bf16.msra.mxu0 %v950
        %961 = vmatprep.subr.bf16.mxu0 0
        %962 = vmatpush1.bf16.msra.mxu0 %v949
        %963 = vmatprep.subr.bf16.mxu0 0
        %964 = vmatpush1.bf16.msra.mxu0 %v948
        %965 = vmatprep.subr.bf16.mxu0 0
        %966 = vmatpush1.bf16.msra.mxu0 %v947
        %967 = vmatprep.subr.bf16.mxu0 0
        %968 = vmatpush1.bf16.msra.mxu0 %v946
        %969 = vmatprep.subr.bf16.mxu0 0
        %970 = vmatpush1.bf16.msra.mxu0 %v945
        %971 = vmatprep.subr.bf16.mxu0 0
        %972 = vmatpush1.bf16.msra.mxu0 %v944
        %973 = vmatprep.subr.bf16.mxu0 0
        %974 = vmatpush1.bf16.msra.mxu0 %v943
        %975 = vmatprep.subr.bf16.mxu0 0
        %976 = vmatpush2.bf16.msra.mxu0 0
        %977 = vmatprep.subr.bf16.mxu0 0
        %978 = vmatpush2.bf16.msra.mxu0 0
        %979 = vmatprep.subr.bf16.mxu0 0
        %980 = vmatpush2.bf16.msra.mxu0 0
        %981 = vmatprep.subr.bf16.mxu0 0
        %982 = vmatpush2.bf16.msra.mxu0 0
        %983 = vmatprep.subr.bf16.mxu0 0
        %984 = vmatpush2.bf16.msra.mxu0 0
        %985 = vmatprep.subr.bf16.mxu0 0
        %986 = vmatpush2.bf16.msra.mxu0 0
        %987 = vmatprep.subr.bf16.mxu0 0
        %988 = vmatpush2.bf16.msra.mxu0 0
        %989 = vmatprep.subr.bf16.mxu0 0
        %990 = vmatpush2.bf16.msra.mxu0 0
        %991 = vmatprep.mubr.bf16.mxu0 0
        %992 = vmatmul.mubr.bf16.gmra.mxu0 %v884
        %v993 = vpop.f32.mrf.mxu0
        %v994 = vadd.f32 %v909, %v993
        %v995 = vpop.f32.mrf.mxu0
        %v996 = vpop.f32.mrf.mxu0
        %v997 = vadd.f32 %v909, %v996
        %v998 = vpop.f32.mrf.mxu0
        %999 = vmatprep.mubr.bf16.mxu0 0
        %1000 = vmatmul.mubr.bf16.gmra.mxu0 %v885
        %v1001 = vpop.f32.mrf.mxu0
        %v1002 = vadd.f32 %v909, %v1001
        %v1003 = vpop.f32.mrf.mxu0
        %v1004 = vpop.f32.mrf.mxu0
        %v1005 = vadd.f32 %v909, %v1004
        %v1006 = vpop.f32.mrf.mxu0
        %1007 = vmatprep.mubr.bf16.mxu0 0
        %1008 = vmatmul.mubr.bf16.gmra.mxu0 %v886
        %v1009 = vpop.f32.mrf.mxu0
        %v1010 = vadd.f32 %v909, %v1009
        %v1011 = vpop.f32.mrf.mxu0
        %v1012 = vpop.f32.mrf.mxu0
        %v1013 = vadd.f32 %v909, %v1012
        %v1014 = vpop.f32.mrf.mxu0
        %1015 = vmatprep.mubr.bf16.mxu0 0
        %1016 = vmatmul.mubr.bf16.gmra.mxu0 %v887
        %v1017 = vpop.f32.mrf.mxu0
        %v1018 = vadd.f32 %v909, %v1017
        %v1019 = vpop.f32.mrf.mxu0
        %v1020 = vpop.f32.mrf.mxu0
        %v1021 = vadd.f32 %v909, %v1020
        %v1022 = vpop.f32.mrf.mxu0
        %1023 = vdwg.mxu0
        %v1024 = vld [vmem:[%s473] sm:$0xf]
        %v1025 = vld [vmem:[%s473 + $0x4] sm:$0xf]
        %v1026 = vld [vmem:[%s473 + $0x8] sm:$0xf]
        %v1027 = vld [vmem:[%s473 + $0xc] sm:$0xf]
        %v1028 = vld [vmem:[%s473 + $0x10] sm:$0xf]
        %v1029 = vld [vmem:[%s473 + $0x14] sm:$0xf]
        %v1030 = vld [vmem:[%s473 + $0x18] sm:$0xf]
        %v1031 = vld [vmem:[%s473 + $0x1c] sm:$0xf]
        %v1032 = vld [vmem:[%s8] sm:$0x3]
        %v1033 = vld [vmem:[%s9] sm:$0x1]
        %v1035 = vlaneseq
        %v1036 = vshrl.u32 %v1035, 7
        %v1037 = vsub.s32 0, %v1036
        %v1038 = vrot.slane %v1033, %v1037
        %v1048 = vunpack.c.l.b16 %v1024
        %v1049 = vunpack.c.l.b16 %v1025
        %v1050 = vunpack.c.l.b16 %v1026
        %v1051 = vunpack.c.l.b16 %v1027
        %v1052 = vunpack.c.l.b16 %v1028
        %v1053 = vunpack.c.l.b16 %v1029
        %v1054 = vunpack.c.l.b16 %v1030
        %v1055 = vunpack.c.l.b16 %v1031
        %v1056 = vpack.c.b16 %v1049, %v1048
        %v1057 = vpack.c.b16 %v1051, %v1050
        %v1058 = vpack.c.b16 %v1053, %v1052
        %v1059 = vpack.c.b16 %v1055, %v1054
        %vm1060 = vcmask 31744
        %v1062 = vsel %vm1060, %v1056, 0
        %v1065 = vsel %vm1060, %v1057, 0
        %v1068 = vsel %vm1060, %v1058, 0
        %v1071 = vsel %vm1060, %v1059, 0
        %v1074 = vsel %vm559, %v1032, 0
        %1076 = vmatprep.subr.bf16.mxu0 0
        %1077 = vmatpush1.bf16.msra.mxu0 0
        %1078 = vmatprep.subr.bf16.mxu0 0
        %1079 = vmatpush1.bf16.msra.mxu0 0
        %1080 = vmatprep.subr.bf16.mxu0 0
        %1081 = vmatpush1.bf16.msra.mxu0 0
        %1082 = vmatprep.subr.bf16.mxu0 0
        %1083 = vmatpush1.bf16.msra.mxu0 0
        %1084 = vmatprep.subr.bf16.mxu0 0
        %1085 = vmatpush1.bf16.msra.mxu0 0
        %1086 = vmatprep.subr.bf16.mxu0 0
        %1087 = vmatpush1.bf16.msra.mxu0 0
        %1088 = vmatprep.subr.bf16.mxu0 0
        %1089 = vmatpush1.bf16.msra.mxu0 0
        %1090 = vmatprep.subr.bf16.mxu0 0
        %1091 = vmatpush1.bf16.msra.mxu0 %v1074
        %1092 = vmatprep.subr.bf16.mxu0 0
        %1093 = vmatpush2.bf16.msra.mxu0 0
        %1094 = vmatprep.subr.bf16.mxu0 0
        %1095 = vmatpush2.bf16.msra.mxu0 0
        %1096 = vmatprep.subr.bf16.mxu0 0
        %1097 = vmatpush2.bf16.msra.mxu0 0
        %1098 = vmatprep.subr.bf16.mxu0 0
        %1099 = vmatpush2.bf16.msra.mxu0 0
        %1100 = vmatprep.subr.bf16.mxu0 0
        %1101 = vmatpush2.bf16.msra.mxu0 0
        %1102 = vmatprep.subr.bf16.mxu0 0
        %1103 = vmatpush2.bf16.msra.mxu0 0
        %1104 = vmatprep.subr.bf16.mxu0 0
        %1105 = vmatpush2.bf16.msra.mxu0 0
        %1106 = vmatprep.subr.bf16.mxu0 0
        %1107 = vmatpush2.bf16.msra.mxu0 0
        %1108 = vmatprep.mubr.bf16.mxu0 0
        %1109 = vmatmul.mubr.bf16.gmra.mxu0 %v1062
        %v1110 = vpop.f32.mrf.mxu0
        %v1111 = vadd.f32 %v1038, %v1110
        %v1112 = vpop.f32.mrf.mxu0
        %v1113 = vpop.f32.mrf.mxu0
        %v1114 = vadd.f32 %v1038, %v1113
        %v1115 = vpop.f32.mrf.mxu0
        %1116 = vmatprep.mubr.bf16.mxu0 0
        %1117 = vmatmul.mubr.bf16.gmra.mxu0 %v1065
        %v1118 = vpop.f32.mrf.mxu0
        %v1119 = vadd.f32 %v1038, %v1118
        %v1120 = vpop.f32.mrf.mxu0
        %v1121 = vpop.f32.mrf.mxu0
        %v1122 = vadd.f32 %v1038, %v1121
        %v1123 = vpop.f32.mrf.mxu0
        %1124 = vmatprep.mubr.bf16.mxu0 0
        %1125 = vmatmul.mubr.bf16.gmra.mxu0 %v1068
        %v1126 = vpop.f32.mrf.mxu0
        %v1127 = vadd.f32 %v1038, %v1126
        %v1128 = vpop.f32.mrf.mxu0
        %v1129 = vpop.f32.mrf.mxu0
        %v1130 = vadd.f32 %v1038, %v1129
        %v1131 = vpop.f32.mrf.mxu0
        %1132 = vmatprep.mubr.bf16.mxu0 0
        %1133 = vmatmul.mubr.bf16.gmra.mxu0 %v1071
        %v1134 = vpop.f32.mrf.mxu0
        %v1135 = vadd.f32 %v1038, %v1134
        %v1136 = vpop.f32.mrf.mxu0
        %v1137 = vpop.f32.mrf.mxu0
        %v1138 = vadd.f32 %v1038, %v1137
        %v1139 = vpop.f32.mrf.mxu0
        %1140 = vdwg.mxu0
        %v1141 = vadd.f32 %v994, %v1111
        %v1142 = vadd.f32 %v997, %v1114
        %v1143 = vadd.f32 %v1002, %v1119
        %v1144 = vadd.f32 %v1005, %v1122
        %v1145 = vadd.f32 %v1010, %v1127
        %v1146 = vadd.f32 %v1013, %v1130
        %v1147 = vadd.f32 %v1018, %v1135
        %v1148 = vadd.f32 %v1021, %v1138
        %v1149 = vld [vmem:[%s10] sm:$0x1]
        %v1150 = vld [vmem:[%s11] sm:$0x1]
        %v1151 = vadd.f32 %v1141, %v1142
        %v1152 = vadd.f32 %v1151, %v1143
        %v1153 = vadd.f32 %v1152, %v1144
        %v1154 = vadd.f32 %v1153, %v1145
        %v1155 = vadd.f32 %v1154, %v1146
        %v1156 = vadd.f32 %v1155, %v1147
        %v1157 = vadd.f32 %v1156, %v1148
        %v1158 = vrot.slane %v1157, 4
        %v1159 = vadd.f32 %v1157, %v1158
        %v1160 = vrot.slane %v1159, 2
        %v1161 = vadd.f32 %v1159, %v1160
        %v1162 = vrot.slane %v1161, 1
        %v1163 = vadd.f32 %v1161, %v1162
        %1164 = vmatprep.subr.mxu0 0.0
        %1165 = vmatpush1.msra.mxu0 %v490
        %1166 = vmatprep.subr.mxu0 0.0
        %1167 = vmatpush1.msra.mxu0 %v489
        %1168 = vmatprep.subr.mxu0 0.0
        %1169 = vmatpush1.msra.mxu0 %v488
        %1170 = vmatprep.subr.mxu0 0.0
        %1171 = vmatpush1.msra.mxu0 %v487
        %1172 = vmatprep.subr.mxu0 0.0
        %1173 = vmatpush1.msra.mxu0 %v486
        %1174 = vmatprep.subr.mxu0 0.0
        %1175 = vmatpush1.msra.mxu0 %v485
        %1176 = vmatprep.subr.mxu0 0.0
        %1177 = vmatpush1.msra.mxu0 %v484
        %1178 = vmatprep.subr.mxu0 0.0
        %1179 = vmatpush1.msra.mxu0 %v483
        %1180 = vmatprep.subr.mxu0 0.0
        %1181 = vmatpush1.msra.mxu0 %v482
        %1182 = vmatprep.subr.mxu0 0.0
        %1183 = vmatpush1.msra.mxu0 %v481
        %1184 = vmatprep.subr.mxu0 0.0
        %1185 = vmatpush1.msra.mxu0 %v480
        %1186 = vmatprep.subr.mxu0 0.0
        %1187 = vmatpush1.msra.mxu0 %v479
        %1188 = vmatprep.subr.mxu0 0.0
        %1189 = vmatpush1.msra.mxu0 %v478
        %1190 = vmatprep.subr.mxu0 0.0
        %1191 = vmatpush1.msra.mxu0 %v477
        %1192 = vmatprep.subr.mxu0 0.0
        %1193 = vmatpush1.msra.mxu0 %v476
        %1194 = vmatprep.subr.mxu0 0.0
        %1195 = vmatpush1.msra.mxu0 %v475
        %1196 = vmatprep.subr.mxu0 0.0
        %1197 = vmatpush2.msra.mxu0 0.0
        %1198 = vmatprep.subr.mxu0 0.0
        %1199 = vmatpush2.msra.mxu0 0.0
        %1200 = vmatprep.subr.mxu0 0.0
        %1201 = vmatpush2.msra.mxu0 0.0
        %1202 = vmatprep.subr.mxu0 0.0
        %1203 = vmatpush2.msra.mxu0 0.0
        %1204 = vmatprep.subr.mxu0 0.0
        %1205 = vmatpush2.msra.mxu0 0.0
        %1206 = vmatprep.subr.mxu0 0.0
        %1207 = vmatpush2.msra.mxu0 0.0
        %1208 = vmatprep.subr.mxu0 0.0
        %1209 = vmatpush2.msra.mxu0 0.0
        %1210 = vmatprep.subr.mxu0 0.0
        %1211 = vmatpush2.msra.mxu0 0.0
        %1212 = vmatprep.subr.mxu0 0.0
        %1213 = vmatpush2.msra.mxu0 0.0
        %1214 = vmatprep.subr.mxu0 0.0
        %1215 = vmatpush2.msra.mxu0 0.0
        %1216 = vmatprep.subr.mxu0 0.0
        %1217 = vmatpush2.msra.mxu0 0.0
        %1218 = vmatprep.subr.mxu0 0.0
        %1219 = vmatpush2.msra.mxu0 0.0
        %1220 = vmatprep.subr.mxu0 0.0
        %1221 = vmatpush2.msra.mxu0 0.0
        %1222 = vmatprep.subr.mxu0 0.0
        %1223 = vmatpush2.msra.mxu0 0.0
        %1224 = vmatprep.subr.mxu0 0.0
        %1225 = vmatpush2.msra.mxu0 0.0
        %1226 = vmatprep.subr.mxu0 0.0
        %1227 = vmatpush2.msra.mxu0 0.0
        %1228 = vmatprep.mubr.f32.mxu0 0.0
        %1229 = vmatmul.mubr.f32.gmra.mxu0 %v1163
        %v1230 = vpop.f32.mrf.mxu0
        %v1231 = vadd.f32 0.0, %v1230
        %v1232 = vpop.f32.mrf.mxu0
        %1233 = vdwg.mxu0
        %v1234 = vmul.f32 %v1231, 0.015625
        %v1235 = vlaneseq
        %v1236 = vshrl.u32 %v1235, 7
        %v1237 = vsub.s32 0, %v1236
        %v1238 = vrot.slane %v1234, %v1237
        %v1239 = vsub.f32 %v1141, %v1238
        %v1240 = vsub.f32 %v1142, %v1238
        %v1241 = vsub.f32 %v1143, %v1238
        %v1242 = vsub.f32 %v1144, %v1238
        %v1243 = vsub.f32 %v1145, %v1238
        %v1244 = vsub.f32 %v1146, %v1238
        %v1245 = vsub.f32 %v1147, %v1238
        %v1246 = vsub.f32 %v1148, %v1238
        %v1247 = vmul.f32 %v1239, %v1239
        %v1248 = vmul.f32 %v1240, %v1240
        %v1249 = vmul.f32 %v1241, %v1241
        %v1250 = vmul.f32 %v1242, %v1242
        %v1251 = vmul.f32 %v1243, %v1243
        %v1252 = vmul.f32 %v1244, %v1244
        %v1253 = vmul.f32 %v1245, %v1245
        %v1254 = vmul.f32 %v1246, %v1246
        %v1255 = vadd.f32 %v1247, %v1248
        %v1256 = vadd.f32 %v1255, %v1249
        %v1257 = vadd.f32 %v1256, %v1250
        %v1258 = vadd.f32 %v1257, %v1251
        %v1259 = vadd.f32 %v1258, %v1252
        %v1260 = vadd.f32 %v1259, %v1253
        %v1261 = vadd.f32 %v1260, %v1254
        %v1262 = vrot.slane %v1261, 4
        %v1263 = vadd.f32 %v1261, %v1262
        %v1264 = vrot.slane %v1263, 2
        %v1265 = vadd.f32 %v1263, %v1264
        %v1266 = vrot.slane %v1265, 1
        %v1267 = vadd.f32 %v1265, %v1266
        %1268 = vmatprep.subr.mxu0 0.0
        %1269 = vmatpush1.msra.mxu0 %v490
        %1270 = vmatprep.subr.mxu0 0.0
        %1271 = vmatpush1.msra.mxu0 %v489
        %1272 = vmatprep.subr.mxu0 0.0
        %1273 = vmatpush1.msra.mxu0 %v488
        %1274 = vmatprep.subr.mxu0 0.0
        %1275 = vmatpush1.msra.mxu0 %v487
        %1276 = vmatprep.subr.mxu0 0.0
        %1277 = vmatpush1.msra.mxu0 %v486
        %1278 = vmatprep.subr.mxu0 0.0
        %1279 = vmatpush1.msra.mxu0 %v485
        %1280 = vmatprep.subr.mxu0 0.0
        %1281 = vmatpush1.msra.mxu0 %v484
        %1282 = vmatprep.subr.mxu0 0.0
        %1283 = vmatpush1.msra.mxu0 %v483
        %1284 = vmatprep.subr.mxu0 0.0
        %1285 = vmatpush1.msra.mxu0 %v482
        %1286 = vmatprep.subr.mxu0 0.0
        %1287 = vmatpush1.msra.mxu0 %v481
        %1288 = vmatprep.subr.mxu0 0.0
        %1289 = vmatpush1.msra.mxu0 %v480
        %1290 = vmatprep.subr.mxu0 0.0
        %1291 = vmatpush1.msra.mxu0 %v479
        %1292 = vmatprep.subr.mxu0 0.0
        %1293 = vmatpush1.msra.mxu0 %v478
        %1294 = vmatprep.subr.mxu0 0.0
        %1295 = vmatpush1.msra.mxu0 %v477
        %1296 = vmatprep.subr.mxu0 0.0
        %1297 = vmatpush1.msra.mxu0 %v476
        %1298 = vmatprep.subr.mxu0 0.0
        %1299 = vmatpush1.msra.mxu0 %v475
        %1300 = vmatprep.subr.mxu0 0.0
        %1301 = vmatpush2.msra.mxu0 0.0
        %1302 = vmatprep.subr.mxu0 0.0
        %1303 = vmatpush2.msra.mxu0 0.0
        %1304 = vmatprep.subr.mxu0 0.0
        %1305 = vmatpush2.msra.mxu0 0.0
        %1306 = vmatprep.subr.mxu0 0.0
        %1307 = vmatpush2.msra.mxu0 0.0
        %1308 = vmatprep.subr.mxu0 0.0
        %1309 = vmatpush2.msra.mxu0 0.0
        %1310 = vmatprep.subr.mxu0 0.0
        %1311 = vmatpush2.msra.mxu0 0.0
        %1312 = vmatprep.subr.mxu0 0.0
        %1313 = vmatpush2.msra.mxu0 0.0
        %1314 = vmatprep.subr.mxu0 0.0
        %1315 = vmatpush2.msra.mxu0 0.0
        %1316 = vmatprep.subr.mxu0 0.0
        %1317 = vmatpush2.msra.mxu0 0.0
        %1318 = vmatprep.subr.mxu0 0.0
        %1319 = vmatpush2.msra.mxu0 0.0
        %1320 = vmatprep.subr.mxu0 0.0
        %1321 = vmatpush2.msra.mxu0 0.0
        %1322 = vmatprep.subr.mxu0 0.0
        %1323 = vmatpush2.msra.mxu0 0.0
        %1324 = vmatprep.subr.mxu0 0.0
        %1325 = vmatpush2.msra.mxu0 0.0
        %1326 = vmatprep.subr.mxu0 0.0
        %1327 = vmatpush2.msra.mxu0 0.0
        %1328 = vmatprep.subr.mxu0 0.0
        %1329 = vmatpush2.msra.mxu0 0.0
        %1330 = vmatprep.subr.mxu0 0.0
        %1331 = vmatpush2.msra.mxu0 0.0
        %1332 = vmatprep.mubr.f32.mxu0 0.0
        %1333 = vmatmul.mubr.f32.gmra.mxu0 %v1267
        %v1334 = vpop.f32.mrf.mxu0
        %v1335 = vadd.f32 0.0, %v1334
        %v1336 = vpop.f32.mrf.mxu0
        %1337 = vdwg.mxu0
        %v1338 = vmul.f32 %v1335, 0.015625
        %v1339 = vadd.f32 %v1338, 1e-05
        %v1340 = vrsqrt.pop %v1339
        %v1341 = vlaneseq
        %v1342 = vshrl.u32 %v1341, 7
        %v1343 = vsub.s32 0, %v1342
        %v1344 = vrot.slane %v1340, %v1343
        %v1345 = vmul.f32 %v1239, %v1344
        %v1346 = vmul.f32 %v1240, %v1344
        %v1347 = vmul.f32 %v1241, %v1344
        %v1348 = vmul.f32 %v1242, %v1344
        %v1349 = vmul.f32 %v1243, %v1344
        %v1350 = vmul.f32 %v1244, %v1344
        %v1351 = vmul.f32 %v1245, %v1344
        %v1352 = vmul.f32 %v1246, %v1344
        %v1354 = vlaneseq
        %v1355 = vshrl.u32 %v1354, 7
        %v1356 = vsub.s32 0, %v1355
        %v1357 = vrot.slane %v1149, %v1356
        %v1359 = vmul.f32 %v1345, %v1357
        %v1360 = vmul.f32 %v1346, %v1357
        %v1361 = vmul.f32 %v1347, %v1357
        %v1362 = vmul.f32 %v1348, %v1357
        %v1363 = vmul.f32 %v1349, %v1357
        %v1364 = vmul.f32 %v1350, %v1357
        %v1365 = vmul.f32 %v1351, %v1357
        %v1366 = vmul.f32 %v1352, %v1357
        %v1368 = vlaneseq
        %v1369 = vshrl.u32 %v1368, 7
        %v1370 = vsub.s32 0, %v1369
        %v1371 = vrot.slane %v1150, %v1370
        %v1373 = vadd.f32 %v1359, %v1371
        %v1374 = vadd.f32 %v1360, %v1371
        %v1375 = vadd.f32 %v1361, %v1371
        %v1376 = vadd.f32 %v1362, %v1371
        %v1377 = vadd.f32 %v1363, %v1371
        %v1378 = vadd.f32 %v1364, %v1371
        %v1379 = vadd.f32 %v1365, %v1371
        %v1380 = vadd.f32 %v1366, %v1371
        %vm1381 = vcmp.gt.f32.partialorder %v1373, 0.0
        %vm1382 = vcmp.gt.f32.partialorder %v1374, 0.0
        %vm1383 = vcmp.gt.f32.partialorder %v1375, 0.0
        %vm1384 = vcmp.gt.f32.partialorder %v1376, 0.0
        %vm1385 = vcmp.gt.f32.partialorder %v1377, 0.0
        %vm1386 = vcmp.gt.f32.partialorder %v1378, 0.0
        %vm1387 = vcmp.gt.f32.partialorder %v1379, 0.0
        %vm1388 = vcmp.gt.f32.partialorder %v1380, 0.0
        %v1389 = vmul.f32 %v1373, 0.01
        %v1390 = vmul.f32 %v1374, 0.01
        %v1391 = vmul.f32 %v1375, 0.01
        %v1392 = vmul.f32 %v1376, 0.01
        %v1393 = vmul.f32 %v1377, 0.01
        %v1394 = vmul.f32 %v1378, 0.01
        %v1395 = vmul.f32 %v1379, 0.01
        %v1396 = vmul.f32 %v1380, 0.01
        %v1397 = vsel %vm1381, %v1373, %v1389
        %v1398 = vsel %vm1382, %v1374, %v1390
        %v1399 = vsel %vm1383, %v1375, %v1391
        %v1400 = vsel %vm1384, %v1376, %v1392
        %v1401 = vsel %vm1385, %v1377, %v1393
        %v1402 = vsel %vm1386, %v1378, %v1394
        %v1403 = vsel %vm1387, %v1379, %v1395
        %v1404 = vsel %vm1388, %v1380, %v1396
        %1405 = vst [vmem:[%s463] sm:$0xff] %v1397
        %1406 = vst [vmem:[%s463 + $0x8] sm:$0xff] %v1398
        %1407 = vst [vmem:[%s463 + $0x10] sm:$0xff] %v1399
        %1408 = vst [vmem:[%s463 + $0x18] sm:$0xff] %v1400
        %1409 = vst [vmem:[%s463 + $0x20] sm:$0xff] %v1401
        %1410 = vst [vmem:[%s463 + $0x28] sm:$0xff] %v1402
        %1411 = vst [vmem:[%s463 + $0x30] sm:$0xff] %v1403
        %1412 = vst [vmem:[%s463 + $0x38] sm:$0xff] %v1404
        %s1413 = sand.u32 %s319, 1
        %s1414 = scalar_lea.sflag [#allocation4], %s1413
        %s1415 = sand.u32 %s319, 1
        %s1416 = smul.addr %s1415, 64
        %s1417 = scalar_lea.vmem [#allocation5], %s1416
        // Predicated region
        $region77: #{tpu_custom_call.1} parent=71 // pred_check
          %p1418 = pneg %p329
        $region78: #{tpu_custom_call.1} parent=71 // pred_check_branch
          %1420 = sbr.rel (%p1418) target = $region80
        $region79: #{tpu_custom_call.1} parent=71 // pred_region
          %s1422 = ssub.s32 1024, 1024
          %1423 = vsyncadd %s1414, %s1422
          %s1424 = smul.addr %s28, 8
          %s1425 = smul.addr %s1424, 128
          %s1426 = scalar_lea.hbm %s13, %s1425
          %s1427 = sshll.u32 %s1417, 4
          %s1428 = int_to_ptr.vmem [resolvable:$true] %s1427
          %1433 = dma.vmem_to_hbm [thread:$0]  %s1428, 1024, %s1426, %s1414, 128, 128, 8
        $region80: #{tpu_custom_call.1} parent=71 // pred_fallthru
          _
      $region72: #{tpu_custom_call.1} parent=5 // pred_fallthru
        _
      %p1434 = scmp.le.s32.totalorder 2, %s23
      // Predicated region
      $region81: #{tpu_custom_call.1} parent=5 // pred_check
        %p1435 = pneg %p1434
      $region82: #{tpu_custom_call.1} parent=5 // pred_check_branch
        %1437 = sbr.rel (%p1435) target = $region84
      $region83: #{tpu_custom_call.1} parent=5 // pred_region
        %s1438 = ssub.s32 %s23, 2
        // Predicated region
        $region85: #{tpu_custom_call.1} parent=83 // pred_check
          %p1439 = pneg %p335
        $region86: #{tpu_custom_call.1} parent=83 // pred_check_branch
          %1441 = sbr.rel (%p1439) target = $region88
        $region87: #{tpu_custom_call.1} parent=83 // pred_region
          %s1442 = sand.u32 %s320, 1
          %s1443 = scalar_lea.sflag [#allocation4], %s1442
          %s1444 = sand.u32 %s320, 1
          %s1445 = smul.addr %s1444, 64
          %s1446 = scalar_lea.vmem [#allocation5], %s1445
          %1447 = dma.done %s1443, 1024
        $region88: #{tpu_custom_call.1} parent=83 // pred_fallthru
          _
      $region84: #{tpu_custom_call.1} parent=5 // pred_fallthru
        _
    $region6: #{tpu_custom_call.1} parent=1 // loop_footer
      %s27 = sadd.s32 1, %s23
    $region7: #{tpu_custom_call.1} parent=1 // loop_footer_branch
      %22 = sbr.rel target = $region3
    $region8: #{tpu_custom_call.1} parent=1 // loop_exit
      _
    %1448 = vsyncpa [#allocation3], 1
    %s1449 = scalar_lea.sflag [#allocation3], 1
    %1450 = vsyncpa %s1449, 1
    %1451 = vsyncpa [#allocation4], 1
    %s1452 = scalar_lea.sflag [#allocation4], 1
    %1453 = vsyncpa %s1452, 1

</llo_original>
